<compile_context>
chip_gen: v7x
topology: tpu7x:2x2x1
jax: 0.10.0
libtpu: 0.0.40
codegen_flags: <defaults>
</compile_context>

<pallas_src>
import functools

import jax
import jax.numpy as jnp
import numpy as np
from jax.experimental import pallas as pl
from jax.experimental.pallas import tpu as pltpu


# ----------------------------------------------------------------------------
# Fused Pallas kernel: all GRU layers + final tanh/fc in one invocation
# ----------------------------------------------------------------------------
def _fused_gru_fc_kernel(*refs, num_layers, T, B, H):
    """Fully fused Generator forward (gru branch).

    Ref layout (all whole-array VMEM blocks):
      refs[0]                seq0    (T*B, input_size)  time-major flattened X
      refs[1]                h0      (num_layers, B, H)
      refs[2 + 4*l + 0]      wih_t   (in_dim_l, 3H)     fused-gate W_ih^T
      refs[2 + 4*l + 1]      whh_t   (H, 3H)            fused-gate W_hh^T
      refs[2 + 4*l + 2]      bgi     (1, 3H)            b_ih (+ b_hh folded for r,z)
      refs[2 + 4*l + 3]      bhn     (1, H)             b_hh of the n gate
      refs[2 + 4*L + 0]      wfc_t   (H, O_pad)         lane-dense-padded fc weight
      refs[2 + 4*L + 1]      bfc     (1, O_pad)
      refs[2 + 4*L + 2]      out     (T*B, O_pad)       output ref (time-major)
    """
    seq_ref = refs[0]
    h0_ref = refs[1]
    base = 2 + 4 * num_layers
    wfc_ref = refs[base]
    bfc_ref = refs[base + 1]
    out_ref = refs[base + 2]

    seq = seq_ref[...].astype(jnp.float32)                       # (T*B, in_dim)

    for l in range(num_layers):
        wih = refs[2 + 4 * l][...].astype(jnp.float32)           # (in_dim, 3H)
        whh = refs[2 + 4 * l + 1][...].astype(jnp.float32)       # (H, 3H)
        bgi = refs[2 + 4 * l + 2][...].astype(jnp.float32)       # (1, 3H)
        bhn = refs[2 + 4 * l + 3][...].astype(jnp.float32)       # (1, H)

        # Input projection for ALL timesteps + all 3 gates: one MXU matmul.
        gi = jnp.dot(seq, wih, preferred_element_type=jnp.float32) + bgi

        h = h0_ref[l].astype(jnp.float32)                        # (B, H)
        h_steps = []

        # Sequential recurrence, statically unrolled (T small & fixed).
        # One fused (B, H) x (H, 3H) matmul per step; gates via lane slices.
        for t in range(T):
            gi_t = gi[t * B:(t + 1) * B, :]                      # (B, 3H)
            gh = jnp.dot(h, whh, preferred_element_type=jnp.float32)
            r = jax.nn.sigmoid(gi_t[:, :H] + gh[:, :H])
            z = jax.nn.sigmoid(gi_t[:, H:2 * H] + gh[:, H:2 * H])
            n = jnp.tanh(gi_t[:, 2 * H:] + r * (gh[:, 2 * H:] + bhn))
            h = (1.0 - z) * n + z * h
            h_steps.append(h)

        # Materialize the layer output once (no per-step VMEM stores).
        seq = jnp.concatenate(h_steps, axis=0)                   # (T*B, H)

    # H = fc(tanh(output)) fused into the same kernel; lane-dense padded store.
    y = jnp.dot(jnp.tanh(seq), wfc_ref[...].astype(jnp.float32),
                preferred_element_type=jnp.float32)
    out_ref[...] = (y + bfc_ref[...].astype(jnp.float32)).astype(out_ref.dtype)


# ----------------------------------------------------------------------------
# One-time weight packing (hoisted out of the per-call forward)
# ----------------------------------------------------------------------------
def _round_up(x, m):
    return ((x + m - 1) // m) * m


def pack_params(params):
    """PyTorch-layout params -> fused-gate, transposed, bias-folded tensors."""
    gru_packed = []
    for (W_ih, W_hh, b_ih, b_hh) in params["gru"]:
        H = W_hh.shape[1]
        wih_t = jnp.asarray(W_ih).T                               # (in_dim, 3H)
        whh_t = jnp.asarray(W_hh).T                               # (H, 3H)
        # Fold b_hh of the r/z gates into the precomputed input-projection bias.
        bgi = jnp.asarray(b_ih).at[:2 * H].add(b_hh[:2 * H]).reshape(1, 3 * H)
        bhn = jnp.asarray(b_hh)[2 * H:].reshape(1, H)             # n-gate hidden bias
        gru_packed.append((wih_t, whh_t, bgi, bhn))

    W_fc, b_fc = params["fc"]
    O, H = W_fc.shape
    O_pad = _round_up(O, 128)                                     # lane-dense output
    wfc_t = jnp.zeros((H, O_pad), jnp.float32).at[:, :O].set(jnp.asarray(W_fc).T)
    bfc = jnp.zeros((1, O_pad), jnp.float32).at[:, :O].set(jnp.asarray(b_fc))
    return {"gru": gru_packed, "fc": (wfc_t, bfc)}


# ----------------------------------------------------------------------------
# Wrapper: single pallas_call on pre-packed weights
# ----------------------------------------------------------------------------
@functools.partial(jax.jit, static_argnames=("output_dim",))
def generator_forward(X, H0, packed, output_dim):
    """X: (B, T, input_size), H0: (num_layers, B, hidden) -> (B, T, output_dim)."""
    B, T, in_dim = X.shape
    num_layers, _, H = H0.shape
    wfc_t, bfc = packed["fc"]
    O_pad = wfc_t.shape[1]

    # Time-major flattened input: row t*B + b == X[b, t]  (single tiny transpose).
    seq0 = jnp.transpose(X, (1, 0, 2)).reshape(T * B, in_dim)

    inputs = [seq0, H0]
    for layer in packed["gru"]:
        inputs.extend(layer)
    inputs.extend([wfc_t, bfc])

    grid_spec = pltpu.PrefetchScalarGridSpec(
        num_scalar_prefetch=0,
        grid=(1,),
        in_specs=[pl.BlockSpec(a.shape, lambda i, n=a.ndim: (0,) * n)
                  for a in inputs],
        out_specs=pl.BlockSpec((T * B, O_pad), lambda i: (0, 0)),
    )

    out = pl.pallas_call(
        functools.partial(_fused_gru_fc_kernel,
                          num_layers=num_layers, T=T, B=B, H=H),
        out_shape=jax.ShapeDtypeStruct((T * B, O_pad), jnp.float32),
        grid_spec=grid_spec,
        compiler_params=pltpu.CompilerParams(
            dimension_semantics=("arbitrary",)),
    )(*inputs)

    # Strip lane padding, back to batch-first (B, T, O); one tiny transpose.
    return out[:, :output_dim].reshape(T, B, output_dim).transpose(1, 0, 2)


# ----------------------------------------------------------------------------
# Pure-JAX reference (for correctness check)
# ----------------------------------------------------------------------------
def generator_reference(X, H0, params):
    B, T, _ = X.shape
    layer_in = X
    for l, (W_ih, W_hh, b_ih, b_hh) in enumerate(params["gru"]):
        Hd = W_hh.shape[1]
        h = H0[l]
        outs = []
        for t in range(T):
            x_t = layer_in[:, t, :]
            gi = x_t @ W_ih.T + b_ih
            gh = h @ W_hh.T + b_hh
            r = jax.nn.sigmoid(gi[:, :Hd] + gh[:, :Hd])
            z = jax.nn.sigmoid(gi[:, Hd:2 * Hd] + gh[:, Hd:2 * Hd])
            n = jnp.tanh(gi[:, 2 * Hd:] + r * gh[:, 2 * Hd:])
            h = (1.0 - z) * n + z * h
            outs.append(h)
        layer_in = jnp.stack(outs, axis=1)
    W_fc, b_fc = params["fc"]
    return jnp.tanh(layer_in) @ W_fc.T + b_fc


# ----------------------------------------------------------------------------
# Deterministic parameter init (mimics nn.GRU / nn.Linear uniform init shapes)
# ----------------------------------------------------------------------------
def init_params(key, input_size, hidden, output_dim, num_layers):
    k = 1.0 / np.sqrt(hidden)
    gru = []
    for l in range(num_layers):
        in_dim = input_size if l == 0 else hidden
        key, k1, k2, k3, k4 = jax.random.split(key, 5)
        W_ih = jax.random.uniform(k1, (3 * hidden, in_dim), jnp.float32, -k, k)
        W_hh = jax.random.uniform(k2, (3 * hidden, hidden), jnp.float32, -k, k)
        b_ih = jax.random.uniform(k3, (3 * hidden,), jnp.float32, -k, k)
        b_hh = jax.random.uniform(k4, (3 * hidden,), jnp.float32, -k, k)
        gru.append((W_ih, W_hh, b_ih, b_hh))
    key, k5, k6 = jax.random.split(key, 3)
    W_fc = jax.random.uniform(k5, (output_dim, hidden), jnp.float32, -k, k)
    b_fc = jax.random.uniform(k6, (output_dim,), jnp.float32, -k, k)
    return {"gru": gru, "fc": (W_fc, b_fc)}


if __name__ == "__main__":
    # Small shapes consistent with Generator(module='gru', ...):
    B, T = 2, 8            # batch, time_stamp
    INPUT_SIZE = 8
    HIDDEN = 32
    OUTPUT_DIM = 32
    NUM_LAYERS = 2

    key = jax.random.PRNGKey(0)
    key, kx, kh, kp = jax.random.split(key, 4)
    X = jax.random.normal(kx, (B, T, INPUT_SIZE), jnp.float32)
    H0 = jax.random.normal(kh, (NUM_LAYERS, B, HIDDEN), jnp.float32)
    params = init_params(kp, INPUT_SIZE, HIDDEN, OUTPUT_DIM, NUM_LAYERS)

    # One-time weight packing (outside the per-call forward).
    packed = jax.tree_util.tree_map(jax.block_until_ready, pack_params(params))

    out = generator_forward(X, H0, packed, OUTPUT_DIM)
    out = jax.block_until_ready(out)

    ref = generator_reference(X, H0, params)
    np.testing.assert_allclose(np.asarray(out), np.asarray(ref),
                               rtol=1e-4, atol=1e-4)
    assert out.shape == (B, T, OUTPUT_DIM)
    print("KERNEL_OK")
</pallas_src>

<mosaic_0001>
module attributes {stable_mosaic.version = 11 : i64} {
  func.func @_fused_gru_fc_kernel(%arg0: i32, %arg1: memref<16x8xf32, #tpu.memory_space<vmem>>, %arg2: memref<2x2x32xf32, #tpu.memory_space<vmem>>, %arg3: memref<8x96xf32, #tpu.memory_space<vmem>>, %arg4: memref<32x96xf32, #tpu.memory_space<vmem>>, %arg5: memref<1x96xf32, #tpu.memory_space<vmem>>, %arg6: memref<1x32xf32, #tpu.memory_space<vmem>>, %arg7: memref<32x96xf32, #tpu.memory_space<vmem>>, %arg8: memref<32x96xf32, #tpu.memory_space<vmem>>, %arg9: memref<1x96xf32, #tpu.memory_space<vmem>>, %arg10: memref<1x32xf32, #tpu.memory_space<vmem>>, %arg11: memref<32x128xf32, #tpu.memory_space<vmem>>, %arg12: memref<1x128xf32, #tpu.memory_space<vmem>>, %arg13: memref<16x128xf32, #tpu.memory_space<vmem>>) attributes {dimension_semantics = [#tpu.dimension_semantics<arbitrary>], iteration_bounds = array<i64: 1>, scalar_prefetch = 0 : i64, scratch_operands = 0 : i64, tpu.core_type = #tpu.core_type<tc>, window_params = [{pipeline_mode = #tpu.pipeline_mode<synchronous>, transform_indices = @transform_0, window_bounds = array<i64: 16, 8>}, {pipeline_mode = #tpu.pipeline_mode<synchronous>, transform_indices = @transform_1, window_bounds = array<i64: 2, 2, 32>}, {pipeline_mode = #tpu.pipeline_mode<synchronous>, transform_indices = @transform_2, window_bounds = array<i64: 8, 96>}, {pipeline_mode = #tpu.pipeline_mode<synchronous>, transform_indices = @transform_3, window_bounds = array<i64: 32, 96>}, {pipeline_mode = #tpu.pipeline_mode<synchronous>, transform_indices = @transform_4, window_bounds = array<i64: 1, 96>}, {pipeline_mode = #tpu.pipeline_mode<synchronous>, transform_indices = @transform_5, window_bounds = array<i64: 1, 32>}, {pipeline_mode = #tpu.pipeline_mode<synchronous>, transform_indices = @transform_6, window_bounds = array<i64: 32, 96>}, {pipeline_mode = #tpu.pipeline_mode<synchronous>, transform_indices = @transform_7, window_bounds = array<i64: 32, 96>}, {pipeline_mode = #tpu.pipeline_mode<synchronous>, transform_indices = @transform_8, window_bounds = array<i64: 1, 96>}, {pipeline_mode = #tpu.pipeline_mode<synchronous>, transform_indices = @transform_9, window_bounds = array<i64: 1, 32>}, {pipeline_mode = #tpu.pipeline_mode<synchronous>, transform_indices = @transform_10, window_bounds = array<i64: 32, 128>}, {pipeline_mode = #tpu.pipeline_mode<synchronous>, transform_indices = @transform_11, window_bounds = array<i64: 1, 128>}, {pipeline_mode = #tpu.pipeline_mode<synchronous>, transform_indices = @transform_12, window_bounds = array<i64: 16, 128>}]} {
    %c0 = arith.constant 0 : index
    %c0_0 = arith.constant 0 : index
    %0 = vector.load %arg1[%c0, %c0_0] : memref<16x8xf32, #tpu.memory_space<vmem>>, vector<16x8xf32>
    %c0_1 = arith.constant 0 : index
    %c0_2 = arith.constant 0 : index
    %1 = vector.load %arg3[%c0_1, %c0_2] : memref<8x96xf32, #tpu.memory_space<vmem>>, vector<8x96xf32>
    %c0_3 = arith.constant 0 : index
    %c0_4 = arith.constant 0 : index
    %2 = vector.load %arg4[%c0_3, %c0_4] : memref<32x96xf32, #tpu.memory_space<vmem>>, vector<32x96xf32>
    %c0_5 = arith.constant 0 : index
    %c0_6 = arith.constant 0 : index
    %3 = vector.load %arg5[%c0_5, %c0_6] : memref<1x96xf32, #tpu.memory_space<vmem>>, vector<1x96xf32>
    %c0_7 = arith.constant 0 : index
    %c0_8 = arith.constant 0 : index
    %4 = vector.load %arg6[%c0_7, %c0_8] : memref<1x32xf32, #tpu.memory_space<vmem>>, vector<1x32xf32>
    %cst = arith.constant dense<0.000000e+00> : vector<16x96xf32>
    %5 = tpu.matmul %0, %1, %cst {dimension_numbers = #tpu.dot_dimension_numbers<[1], [0], [0], [1], [0, 0, 1, 1], [], []>} : vector<16x8xf32>, vector<8x96xf32>, vector<16x96xf32> -> vector<16x96xf32>
    %6 = vector.broadcast %3 : vector<1x96xf32> to vector<16x96xf32>
    %7 = arith.addf %5, %6 : vector<16x96xf32>
    %c0_9 = arith.constant 0 : index
    %c0_10 = arith.constant 0 : index
    %c0_11 = arith.constant 0 : index
    %8 = vector.load %arg2[%c0_9, %c0_10, %c0_11] : memref<2x2x32xf32, #tpu.memory_space<vmem>>, vector<1x2x32xf32>
    %9 = vector.shape_cast %8 : vector<1x2x32xf32> to vector<2x32xf32>
    %10 = vector.extract_strided_slice %7 {offsets = [0, 0], sizes = [2, 96], strides = [1, 1]} : vector<16x96xf32> to vector<2x96xf32>
    %cst_12 = arith.constant dense<0.000000e+00> : vector<2x96xf32>
    %11 = tpu.matmul %9, %2, %cst_12 {dimension_numbers = #tpu.dot_dimension_numbers<[1], [0], [0], [1], [0, 0, 1, 1], [], []>} : vector<2x32xf32>, vector<32x96xf32>, vector<2x96xf32> -> vector<2x96xf32>
    %12 = vector.extract_strided_slice %10 {offsets = [0, 0], sizes = [2, 32], strides = [1, 1]} : vector<2x96xf32> to vector<2x32xf32>
    %13 = vector.extract_strided_slice %11 {offsets = [0, 0], sizes = [2, 32], strides = [1, 1]} : vector<2x96xf32> to vector<2x32xf32>
    %14 = arith.addf %12, %13 : vector<2x32xf32>
    %15 = arith.negf %14 : vector<2x32xf32>
    %16 = math.exp %15 : vector<2x32xf32>
    %cst_13 = arith.constant 1.000000e+00 : f32
    %17 = vector.broadcast %cst_13 : f32 to vector<2x32xf32>
    %18 = arith.addf %17, %16 : vector<2x32xf32>
    %19 = arith.divf %17, %18 : vector<2x32xf32>
    %20 = vector.extract_strided_slice %10 {offsets = [0, 32], sizes = [2, 32], strides = [1, 1]} : vector<2x96xf32> to vector<2x32xf32>
    %21 = vector.extract_strided_slice %11 {offsets = [0, 32], sizes = [2, 32], strides = [1, 1]} : vector<2x96xf32> to vector<2x32xf32>
    %22 = arith.addf %20, %21 : vector<2x32xf32>
    %23 = arith.negf %22 : vector<2x32xf32>
    %24 = math.exp %23 : vector<2x32xf32>
    %cst_14 = arith.constant 1.000000e+00 : f32
    %25 = vector.broadcast %cst_14 : f32 to vector<2x32xf32>
    %26 = arith.addf %25, %24 : vector<2x32xf32>
    %27 = arith.divf %25, %26 : vector<2x32xf32>
    %28 = vector.extract_strided_slice %10 {offsets = [0, 64], sizes = [2, 32], strides = [1, 1]} : vector<2x96xf32> to vector<2x32xf32>
    %29 = vector.extract_strided_slice %11 {offsets = [0, 64], sizes = [2, 32], strides = [1, 1]} : vector<2x96xf32> to vector<2x32xf32>
    %30 = vector.broadcast %4 : vector<1x32xf32> to vector<2x32xf32>
    %31 = arith.addf %29, %30 : vector<2x32xf32>
    %32 = arith.mulf %19, %31 : vector<2x32xf32>
    %33 = arith.addf %28, %32 : vector<2x32xf32>
    %34 = math.tanh %33 : vector<2x32xf32>
    %cst_15 = arith.constant 1.000000e+00 : f32
    %35 = vector.broadcast %cst_15 : f32 to vector<2x32xf32>
    %36 = arith.subf %35, %27 : vector<2x32xf32>
    %37 = arith.mulf %36, %34 : vector<2x32xf32>
    %38 = arith.mulf %27, %9 : vector<2x32xf32>
    %39 = arith.addf %37, %38 : vector<2x32xf32>
    %40 = vector.extract_strided_slice %7 {offsets = [2, 0], sizes = [2, 96], strides = [1, 1]} : vector<16x96xf32> to vector<2x96xf32>
    %cst_16 = arith.constant dense<0.000000e+00> : vector<2x96xf32>
    %41 = tpu.matmul %39, %2, %cst_16 {dimension_numbers = #tpu.dot_dimension_numbers<[1], [0], [0], [1], [0, 0, 1, 1], [], []>} : vector<2x32xf32>, vector<32x96xf32>, vector<2x96xf32> -> vector<2x96xf32>
    %42 = vector.extract_strided_slice %40 {offsets = [0, 0], sizes = [2, 32], strides = [1, 1]} : vector<2x96xf32> to vector<2x32xf32>
    %43 = vector.extract_strided_slice %41 {offsets = [0, 0], sizes = [2, 32], strides = [1, 1]} : vector<2x96xf32> to vector<2x32xf32>
    %44 = arith.addf %42, %43 : vector<2x32xf32>
    %45 = arith.negf %44 : vector<2x32xf32>
    %46 = math.exp %45 : vector<2x32xf32>
    %cst_17 = arith.constant 1.000000e+00 : f32
    %47 = vector.broadcast %cst_17 : f32 to vector<2x32xf32>
    %48 = arith.addf %47, %46 : vector<2x32xf32>
    %49 = arith.divf %47, %48 : vector<2x32xf32>
    %50 = vector.extract_strided_slice %40 {offsets = [0, 32], sizes = [2, 32], strides = [1, 1]} : vector<2x96xf32> to vector<2x32xf32>
    %51 = vector.extract_strided_slice %41 {offsets = [0, 32], sizes = [2, 32], strides = [1, 1]} : vector<2x96xf32> to vector<2x32xf32>
    %52 = arith.addf %50, %51 : vector<2x32xf32>
    %53 = arith.negf %52 : vector<2x32xf32>
    %54 = math.exp %53 : vector<2x32xf32>
    %cst_18 = arith.constant 1.000000e+00 : f32
    %55 = vector.broadcast %cst_18 : f32 to vector<2x32xf32>
    %56 = arith.addf %55, %54 : vector<2x32xf32>
    %57 = arith.divf %55, %56 : vector<2x32xf32>
    %58 = vector.extract_strided_slice %40 {offsets = [0, 64], sizes = [2, 32], strides = [1, 1]} : vector<2x96xf32> to vector<2x32xf32>
    %59 = vector.extract_strided_slice %41 {offsets = [0, 64], sizes = [2, 32], strides = [1, 1]} : vector<2x96xf32> to vector<2x32xf32>
    %60 = vector.broadcast %4 : vector<1x32xf32> to vector<2x32xf32>
    %61 = arith.addf %59, %60 : vector<2x32xf32>
    %62 = arith.mulf %49, %61 : vector<2x32xf32>
    %63 = arith.addf %58, %62 : vector<2x32xf32>
    %64 = math.tanh %63 : vector<2x32xf32>
    %cst_19 = arith.constant 1.000000e+00 : f32
    %65 = vector.broadcast %cst_19 : f32 to vector<2x32xf32>
    %66 = arith.subf %65, %57 : vector<2x32xf32>
    %67 = arith.mulf %66, %64 : vector<2x32xf32>
    %68 = arith.mulf %57, %39 : vector<2x32xf32>
    %69 = arith.addf %67, %68 : vector<2x32xf32>
    %70 = vector.extract_strided_slice %7 {offsets = [4, 0], sizes = [2, 96], strides = [1, 1]} : vector<16x96xf32> to vector<2x96xf32>
    %cst_20 = arith.constant dense<0.000000e+00> : vector<2x96xf32>
    %71 = tpu.matmul %69, %2, %cst_20 {dimension_numbers = #tpu.dot_dimension_numbers<[1], [0], [0], [1], [0, 0, 1, 1], [], []>} : vector<2x32xf32>, vector<32x96xf32>, vector<2x96xf32> -> vector<2x96xf32>
    %72 = vector.extract_strided_slice %70 {offsets = [0, 0], sizes = [2, 32], strides = [1, 1]} : vector<2x96xf32> to vector<2x32xf32>
    %73 = vector.extract_strided_slice %71 {offsets = [0, 0], sizes = [2, 32], strides = [1, 1]} : vector<2x96xf32> to vector<2x32xf32>
    %74 = arith.addf %72, %73 : vector<2x32xf32>
    %75 = arith.negf %74 : vector<2x32xf32>
    %76 = math.exp %75 : vector<2x32xf32>
    %cst_21 = arith.constant 1.000000e+00 : f32
    %77 = vector.broadcast %cst_21 : f32 to vector<2x32xf32>
    %78 = arith.addf %77, %76 : vector<2x32xf32>
    %79 = arith.divf %77, %78 : vector<2x32xf32>
    %80 = vector.extract_strided_slice %70 {offsets = [0, 32], sizes = [2, 32], strides = [1, 1]} : vector<2x96xf32> to vector<2x32xf32>
    %81 = vector.extract_strided_slice %71 {offsets = [0, 32], sizes = [2, 32], strides = [1, 1]} : vector<2x96xf32> to vector<2x32xf32>
    %82 = arith.addf %80, %81 : vector<2x32xf32>
    %83 = arith.negf %82 : vector<2x32xf32>
    %84 = math.exp %83 : vector<2x32xf32>
    %cst_22 = arith.constant 1.000000e+00 : f32
    %85 = vector.broadcast %cst_22 : f32 to vector<2x32xf32>
    %86 = arith.addf %85, %84 : vector<2x32xf32>
    %87 = arith.divf %85, %86 : vector<2x32xf32>
    %88 = vector.extract_strided_slice %70 {offsets = [0, 64], sizes = [2, 32], strides = [1, 1]} : vector<2x96xf32> to vector<2x32xf32>
    %89 = vector.extract_strided_slice %71 {offsets = [0, 64], sizes = [2, 32], strides = [1, 1]} : vector<2x96xf32> to vector<2x32xf32>
    %90 = vector.broadcast %4 : vector<1x32xf32> to vector<2x32xf32>
    %91 = arith.addf %89, %90 : vector<2x32xf32>
    %92 = arith.mulf %79, %91 : vector<2x32xf32>
    %93 = arith.addf %88, %92 : vector<2x32xf32>
    %94 = math.tanh %93 : vector<2x32xf32>
    %cst_23 = arith.constant 1.000000e+00 : f32
    %95 = vector.broadcast %cst_23 : f32 to vector<2x32xf32>
    %96 = arith.subf %95, %87 : vector<2x32xf32>
    %97 = arith.mulf %96, %94 : vector<2x32xf32>
    %98 = arith.mulf %87, %69 : vector<2x32xf32>
    %99 = arith.addf %97, %98 : vector<2x32xf32>
    %100 = vector.extract_strided_slice %7 {offsets = [6, 0], sizes = [2, 96], strides = [1, 1]} : vector<16x96xf32> to vector<2x96xf32>
    %cst_24 = arith.constant dense<0.000000e+00> : vector<2x96xf32>
    %101 = tpu.matmul %99, %2, %cst_24 {dimension_numbers = #tpu.dot_dimension_numbers<[1], [0], [0], [1], [0, 0, 1, 1], [], []>} : vector<2x32xf32>, vector<32x96xf32>, vector<2x96xf32> -> vector<2x96xf32>
    %102 = vector.extract_strided_slice %100 {offsets = [0, 0], sizes = [2, 32], strides = [1, 1]} : vector<2x96xf32> to vector<2x32xf32>
    %103 = vector.extract_strided_slice %101 {offsets = [0, 0], sizes = [2, 32], strides = [1, 1]} : vector<2x96xf32> to vector<2x32xf32>
    %104 = arith.addf %102, %103 : vector<2x32xf32>
    %105 = arith.negf %104 : vector<2x32xf32>
    %106 = math.exp %105 : vector<2x32xf32>
    %cst_25 = arith.constant 1.000000e+00 : f32
    %107 = vector.broadcast %cst_25 : f32 to vector<2x32xf32>
    %108 = arith.addf %107, %106 : vector<2x32xf32>
    %109 = arith.divf %107, %108 : vector<2x32xf32>
    %110 = vector.extract_strided_slice %100 {offsets = [0, 32], sizes = [2, 32], strides = [1, 1]} : vector<2x96xf32> to vector<2x32xf32>
    %111 = vector.extract_strided_slice %101 {offsets = [0, 32], sizes = [2, 32], strides = [1, 1]} : vector<2x96xf32> to vector<2x32xf32>
    %112 = arith.addf %110, %111 : vector<2x32xf32>
    %113 = arith.negf %112 : vector<2x32xf32>
    %114 = math.exp %113 : vector<2x32xf32>
    %cst_26 = arith.constant 1.000000e+00 : f32
    %115 = vector.broadcast %cst_26 : f32 to vector<2x32xf32>
    %116 = arith.addf %115, %114 : vector<2x32xf32>
    %117 = arith.divf %115, %116 : vector<2x32xf32>
    %118 = vector.extract_strided_slice %100 {offsets = [0, 64], sizes = [2, 32], strides = [1, 1]} : vector<2x96xf32> to vector<2x32xf32>
    %119 = vector.extract_strided_slice %101 {offsets = [0, 64], sizes = [2, 32], strides = [1, 1]} : vector<2x96xf32> to vector<2x32xf32>
    %120 = vector.broadcast %4 : vector<1x32xf32> to vector<2x32xf32>
    %121 = arith.addf %119, %120 : vector<2x32xf32>
    %122 = arith.mulf %109, %121 : vector<2x32xf32>
    %123 = arith.addf %118, %122 : vector<2x32xf32>
    %124 = math.tanh %123 : vector<2x32xf32>
    %cst_27 = arith.constant 1.000000e+00 : f32
    %125 = vector.broadcast %cst_27 : f32 to vector<2x32xf32>
    %126 = arith.subf %125, %117 : vector<2x32xf32>
    %127 = arith.mulf %126, %124 : vector<2x32xf32>
    %128 = arith.mulf %117, %99 : vector<2x32xf32>
    %129 = arith.addf %127, %128 : vector<2x32xf32>
    %130 = vector.extract_strided_slice %7 {offsets = [8, 0], sizes = [2, 96], strides = [1, 1]} : vector<16x96xf32> to vector<2x96xf32>
    %cst_28 = arith.constant dense<0.000000e+00> : vector<2x96xf32>
    %131 = tpu.matmul %129, %2, %cst_28 {dimension_numbers = #tpu.dot_dimension_numbers<[1], [0], [0], [1], [0, 0, 1, 1], [], []>} : vector<2x32xf32>, vector<32x96xf32>, vector<2x96xf32> -> vector<2x96xf32>
    %132 = vector.extract_strided_slice %130 {offsets = [0, 0], sizes = [2, 32], strides = [1, 1]} : vector<2x96xf32> to vector<2x32xf32>
    %133 = vector.extract_strided_slice %131 {offsets = [0, 0], sizes = [2, 32], strides = [1, 1]} : vector<2x96xf32> to vector<2x32xf32>
    %134 = arith.addf %132, %133 : vector<2x32xf32>
    %135 = arith.negf %134 : vector<2x32xf32>
    %136 = math.exp %135 : vector<2x32xf32>
    %cst_29 = arith.constant 1.000000e+00 : f32
    %137 = vector.broadcast %cst_29 : f32 to vector<2x32xf32>
    %138 = arith.addf %137, %136 : vector<2x32xf32>
    %139 = arith.divf %137, %138 : vector<2x32xf32>
    %140 = vector.extract_strided_slice %130 {offsets = [0, 32], sizes = [2, 32], strides = [1, 1]} : vector<2x96xf32> to vector<2x32xf32>
    %141 = vector.extract_strided_slice %131 {offsets = [0, 32], sizes = [2, 32], strides = [1, 1]} : vector<2x96xf32> to vector<2x32xf32>
    %142 = arith.addf %140, %141 : vector<2x32xf32>
    %143 = arith.negf %142 : vector<2x32xf32>
    %144 = math.exp %143 : vector<2x32xf32>
    %cst_30 = arith.constant 1.000000e+00 : f32
    %145 = vector.broadcast %cst_30 : f32 to vector<2x32xf32>
    %146 = arith.addf %145, %144 : vector<2x32xf32>
    %147 = arith.divf %145, %146 : vector<2x32xf32>
    %148 = vector.extract_strided_slice %130 {offsets = [0, 64], sizes = [2, 32], strides = [1, 1]} : vector<2x96xf32> to vector<2x32xf32>
    %149 = vector.extract_strided_slice %131 {offsets = [0, 64], sizes = [2, 32], strides = [1, 1]} : vector<2x96xf32> to vector<2x32xf32>
    %150 = vector.broadcast %4 : vector<1x32xf32> to vector<2x32xf32>
    %151 = arith.addf %149, %150 : vector<2x32xf32>
    %152 = arith.mulf %139, %151 : vector<2x32xf32>
    %153 = arith.addf %148, %152 : vector<2x32xf32>
    %154 = math.tanh %153 : vector<2x32xf32>
    %cst_31 = arith.constant 1.000000e+00 : f32
    %155 = vector.broadcast %cst_31 : f32 to vector<2x32xf32>
    %156 = arith.subf %155, %147 : vector<2x32xf32>
    %157 = arith.mulf %156, %154 : vector<2x32xf32>
    %158 = arith.mulf %147, %129 : vector<2x32xf32>
    %159 = arith.addf %157, %158 : vector<2x32xf32>
    %160 = vector.extract_strided_slice %7 {offsets = [10, 0], sizes = [2, 96], strides = [1, 1]} : vector<16x96xf32> to vector<2x96xf32>
    %cst_32 = arith.constant dense<0.000000e+00> : vector<2x96xf32>
    %161 = tpu.matmul %159, %2, %cst_32 {dimension_numbers = #tpu.dot_dimension_numbers<[1], [0], [0], [1], [0, 0, 1, 1], [], []>} : vector<2x32xf32>, vector<32x96xf32>, vector<2x96xf32> -> vector<2x96xf32>
    %162 = vector.extract_strided_slice %160 {offsets = [0, 0], sizes = [2, 32], strides = [1, 1]} : vector<2x96xf32> to vector<2x32xf32>
    %163 = vector.extract_strided_slice %161 {offsets = [0, 0], sizes = [2, 32], strides = [1, 1]} : vector<2x96xf32> to vector<2x32xf32>
    %164 = arith.addf %162, %163 : vector<2x32xf32>
    %165 = arith.negf %164 : vector<2x32xf32>
    %166 = math.exp %165 : vector<2x32xf32>
    %cst_33 = arith.constant 1.000000e+00 : f32
    %167 = vector.broadcast %cst_33 : f32 to vector<2x32xf32>
    %168 = arith.addf %167, %166 : vector<2x32xf32>
    %169 = arith.divf %167, %168 : vector<2x32xf32>
    %170 = vector.extract_strided_slice %160 {offsets = [0, 32], sizes = [2, 32], strides = [1, 1]} : vector<2x96xf32> to vector<2x32xf32>
    %171 = vector.extract_strided_slice %161 {offsets = [0, 32], sizes = [2, 32], strides = [1, 1]} : vector<2x96xf32> to vector<2x32xf32>
    %172 = arith.addf %170, %171 : vector<2x32xf32>
    %173 = arith.negf %172 : vector<2x32xf32>
    %174 = math.exp %173 : vector<2x32xf32>
    %cst_34 = arith.constant 1.000000e+00 : f32
    %175 = vector.broadcast %cst_34 : f32 to vector<2x32xf32>
    %176 = arith.addf %175, %174 : vector<2x32xf32>
    %177 = arith.divf %175, %176 : vector<2x32xf32>
    %178 = vector.extract_strided_slice %160 {offsets = [0, 64], sizes = [2, 32], strides = [1, 1]} : vector<2x96xf32> to vector<2x32xf32>
    %179 = vector.extract_strided_slice %161 {offsets = [0, 64], sizes = [2, 32], strides = [1, 1]} : vector<2x96xf32> to vector<2x32xf32>
    %180 = vector.broadcast %4 : vector<1x32xf32> to vector<2x32xf32>
    %181 = arith.addf %179, %180 : vector<2x32xf32>
    %182 = arith.mulf %169, %181 : vector<2x32xf32>
    %183 = arith.addf %178, %182 : vector<2x32xf32>
    %184 = math.tanh %183 : vector<2x32xf32>
    %cst_35 = arith.constant 1.000000e+00 : f32
    %185 = vector.broadcast %cst_35 : f32 to vector<2x32xf32>
    %186 = arith.subf %185, %177 : vector<2x32xf32>
    %187 = arith.mulf %186, %184 : vector<2x32xf32>
    %188 = arith.mulf %177, %159 : vector<2x32xf32>
    %189 = arith.addf %187, %188 : vector<2x32xf32>
    %190 = vector.extract_strided_slice %7 {offsets = [12, 0], sizes = [2, 96], strides = [1, 1]} : vector<16x96xf32> to vector<2x96xf32>
    %cst_36 = arith.constant dense<0.000000e+00> : vector<2x96xf32>
    %191 = tpu.matmul %189, %2, %cst_36 {dimension_numbers = #tpu.dot_dimension_numbers<[1], [0], [0], [1], [0, 0, 1, 1], [], []>} : vector<2x32xf32>, vector<32x96xf32>, vector<2x96xf32> -> vector<2x96xf32>
    %192 = vector.extract_strided_slice %190 {offsets = [0, 0], sizes = [2, 32], strides = [1, 1]} : vector<2x96xf32> to vector<2x32xf32>
    %193 = vector.extract_strided_slice %191 {offsets = [0, 0], sizes = [2, 32], strides = [1, 1]} : vector<2x96xf32> to vector<2x32xf32>
    %194 = arith.addf %192, %193 : vector<2x32xf32>
    %195 = arith.negf %194 : vector<2x32xf32>
    %196 = math.exp %195 : vector<2x32xf32>
    %cst_37 = arith.constant 1.000000e+00 : f32
    %197 = vector.broadcast %cst_37 : f32 to vector<2x32xf32>
    %198 = arith.addf %197, %196 : vector<2x32xf32>
    %199 = arith.divf %197, %198 : vector<2x32xf32>
    %200 = vector.extract_strided_slice %190 {offsets = [0, 32], sizes = [2, 32], strides = [1, 1]} : vector<2x96xf32> to vector<2x32xf32>
    %201 = vector.extract_strided_slice %191 {offsets = [0, 32], sizes = [2, 32], strides = [1, 1]} : vector<2x96xf32> to vector<2x32xf32>
    %202 = arith.addf %200, %201 : vector<2x32xf32>
    %203 = arith.negf %202 : vector<2x32xf32>
    %204 = math.exp %203 : vector<2x32xf32>
    %cst_38 = arith.constant 1.000000e+00 : f32
    %205 = vector.broadcast %cst_38 : f32 to vector<2x32xf32>
    %206 = arith.addf %205, %204 : vector<2x32xf32>
    %207 = arith.divf %205, %206 : vector<2x32xf32>
    %208 = vector.extract_strided_slice %190 {offsets = [0, 64], sizes = [2, 32], strides = [1, 1]} : vector<2x96xf32> to vector<2x32xf32>
    %209 = vector.extract_strided_slice %191 {offsets = [0, 64], sizes = [2, 32], strides = [1, 1]} : vector<2x96xf32> to vector<2x32xf32>
    %210 = vector.broadcast %4 : vector<1x32xf32> to vector<2x32xf32>
    %211 = arith.addf %209, %210 : vector<2x32xf32>
    %212 = arith.mulf %199, %211 : vector<2x32xf32>
    %213 = arith.addf %208, %212 : vector<2x32xf32>
    %214 = math.tanh %213 : vector<2x32xf32>
    %cst_39 = arith.constant 1.000000e+00 : f32
    %215 = vector.broadcast %cst_39 : f32 to vector<2x32xf32>
    %216 = arith.subf %215, %207 : vector<2x32xf32>
    %217 = arith.mulf %216, %214 : vector<2x32xf32>
    %218 = arith.mulf %207, %189 : vector<2x32xf32>
    %219 = arith.addf %217, %218 : vector<2x32xf32>
    %220 = vector.extract_strided_slice %7 {offsets = [14, 0], sizes = [2, 96], strides = [1, 1]} : vector<16x96xf32> to vector<2x96xf32>
    %cst_40 = arith.constant dense<0.000000e+00> : vector<2x96xf32>
    %221 = tpu.matmul %219, %2, %cst_40 {dimension_numbers = #tpu.dot_dimension_numbers<[1], [0], [0], [1], [0, 0, 1, 1], [], []>} : vector<2x32xf32>, vector<32x96xf32>, vector<2x96xf32> -> vector<2x96xf32>
    %222 = vector.extract_strided_slice %220 {offsets = [0, 0], sizes = [2, 32], strides = [1, 1]} : vector<2x96xf32> to vector<2x32xf32>
    %223 = vector.extract_strided_slice %221 {offsets = [0, 0], sizes = [2, 32], strides = [1, 1]} : vector<2x96xf32> to vector<2x32xf32>
    %224 = arith.addf %222, %223 : vector<2x32xf32>
    %225 = arith.negf %224 : vector<2x32xf32>
    %226 = math.exp %225 : vector<2x32xf32>
    %cst_41 = arith.constant 1.000000e+00 : f32
    %227 = vector.broadcast %cst_41 : f32 to vector<2x32xf32>
    %228 = arith.addf %227, %226 : vector<2x32xf32>
    %229 = arith.divf %227, %228 : vector<2x32xf32>
    %230 = vector.extract_strided_slice %220 {offsets = [0, 32], sizes = [2, 32], strides = [1, 1]} : vector<2x96xf32> to vector<2x32xf32>
    %231 = vector.extract_strided_slice %221 {offsets = [0, 32], sizes = [2, 32], strides = [1, 1]} : vector<2x96xf32> to vector<2x32xf32>
    %232 = arith.addf %230, %231 : vector<2x32xf32>
    %233 = arith.negf %232 : vector<2x32xf32>
    %234 = math.exp %233 : vector<2x32xf32>
    %cst_42 = arith.constant 1.000000e+00 : f32
    %235 = vector.broadcast %cst_42 : f32 to vector<2x32xf32>
    %236 = arith.addf %235, %234 : vector<2x32xf32>
    %237 = arith.divf %235, %236 : vector<2x32xf32>
    %238 = vector.extract_strided_slice %220 {offsets = [0, 64], sizes = [2, 32], strides = [1, 1]} : vector<2x96xf32> to vector<2x32xf32>
    %239 = vector.extract_strided_slice %221 {offsets = [0, 64], sizes = [2, 32], strides = [1, 1]} : vector<2x96xf32> to vector<2x32xf32>
    %240 = vector.broadcast %4 : vector<1x32xf32> to vector<2x32xf32>
    %241 = arith.addf %239, %240 : vector<2x32xf32>
    %242 = arith.mulf %229, %241 : vector<2x32xf32>
    %243 = arith.addf %238, %242 : vector<2x32xf32>
    %244 = math.tanh %243 : vector<2x32xf32>
    %cst_43 = arith.constant 1.000000e+00 : f32
    %245 = vector.broadcast %cst_43 : f32 to vector<2x32xf32>
    %246 = arith.subf %245, %237 : vector<2x32xf32>
    %247 = arith.mulf %246, %244 : vector<2x32xf32>
    %248 = arith.mulf %237, %219 : vector<2x32xf32>
    %249 = arith.addf %247, %248 : vector<2x32xf32>
    %250 = tpu.concatenate %39, %69, %99, %129, %159, %189, %219, %249 in 0 : vector<2x32xf32>, vector<2x32xf32>, vector<2x32xf32>, vector<2x32xf32>, vector<2x32xf32>, vector<2x32xf32>, vector<2x32xf32>, vector<2x32xf32> -> vector<16x32xf32>
    %c0_44 = arith.constant 0 : index
    %c0_45 = arith.constant 0 : index
    %251 = vector.load %arg7[%c0_44, %c0_45] : memref<32x96xf32, #tpu.memory_space<vmem>>, vector<32x96xf32>
    %c0_46 = arith.constant 0 : index
    %c0_47 = arith.constant 0 : index
    %252 = vector.load %arg8[%c0_46, %c0_47] : memref<32x96xf32, #tpu.memory_space<vmem>>, vector<32x96xf32>
    %c0_48 = arith.constant 0 : index
    %c0_49 = arith.constant 0 : index
    %253 = vector.load %arg9[%c0_48, %c0_49] : memref<1x96xf32, #tpu.memory_space<vmem>>, vector<1x96xf32>
    %c0_50 = arith.constant 0 : index
    %c0_51 = arith.constant 0 : index
    %254 = vector.load %arg10[%c0_50, %c0_51] : memref<1x32xf32, #tpu.memory_space<vmem>>, vector<1x32xf32>
    %cst_52 = arith.constant dense<0.000000e+00> : vector<16x96xf32>
    %255 = tpu.matmul %250, %251, %cst_52 {dimension_numbers = #tpu.dot_dimension_numbers<[1], [0], [0], [1], [0, 0, 1, 1], [], []>} : vector<16x32xf32>, vector<32x96xf32>, vector<16x96xf32> -> vector<16x96xf32>
    %256 = vector.broadcast %253 : vector<1x96xf32> to vector<16x96xf32>
    %257 = arith.addf %255, %256 : vector<16x96xf32>
    %c1 = arith.constant 1 : index
    %c0_53 = arith.constant 0 : index
    %c0_54 = arith.constant 0 : index
    %258 = vector.load %arg2[%c1, %c0_53, %c0_54] : memref<2x2x32xf32, #tpu.memory_space<vmem>>, vector<1x2x32xf32>
    %259 = vector.shape_cast %258 : vector<1x2x32xf32> to vector<2x32xf32>
    %260 = vector.extract_strided_slice %257 {offsets = [0, 0], sizes = [2, 96], strides = [1, 1]} : vector<16x96xf32> to vector<2x96xf32>
    %cst_55 = arith.constant dense<0.000000e+00> : vector<2x96xf32>
    %261 = tpu.matmul %259, %252, %cst_55 {dimension_numbers = #tpu.dot_dimension_numbers<[1], [0], [0], [1], [0, 0, 1, 1], [], []>} : vector<2x32xf32>, vector<32x96xf32>, vector<2x96xf32> -> vector<2x96xf32>
    %262 = vector.extract_strided_slice %260 {offsets = [0, 0], sizes = [2, 32], strides = [1, 1]} : vector<2x96xf32> to vector<2x32xf32>
    %263 = vector.extract_strided_slice %261 {offsets = [0, 0], sizes = [2, 32], strides = [1, 1]} : vector<2x96xf32> to vector<2x32xf32>
    %264 = arith.addf %262, %263 : vector<2x32xf32>
    %265 = arith.negf %264 : vector<2x32xf32>
    %266 = math.exp %265 : vector<2x32xf32>
    %cst_56 = arith.constant 1.000000e+00 : f32
    %267 = vector.broadcast %cst_56 : f32 to vector<2x32xf32>
    %268 = arith.addf %267, %266 : vector<2x32xf32>
    %269 = arith.divf %267, %268 : vector<2x32xf32>
    %270 = vector.extract_strided_slice %260 {offsets = [0, 32], sizes = [2, 32], strides = [1, 1]} : vector<2x96xf32> to vector<2x32xf32>
    %271 = vector.extract_strided_slice %261 {offsets = [0, 32], sizes = [2, 32], strides = [1, 1]} : vector<2x96xf32> to vector<2x32xf32>
    %272 = arith.addf %270, %271 : vector<2x32xf32>
    %273 = arith.negf %272 : vector<2x32xf32>
    %274 = math.exp %273 : vector<2x32xf32>
    %cst_57 = arith.constant 1.000000e+00 : f32
    %275 = vector.broadcast %cst_57 : f32 to vector<2x32xf32>
    %276 = arith.addf %275, %274 : vector<2x32xf32>
    %277 = arith.divf %275, %276 : vector<2x32xf32>
    %278 = vector.extract_strided_slice %260 {offsets = [0, 64], sizes = [2, 32], strides = [1, 1]} : vector<2x96xf32> to vector<2x32xf32>
    %279 = vector.extract_strided_slice %261 {offsets = [0, 64], sizes = [2, 32], strides = [1, 1]} : vector<2x96xf32> to vector<2x32xf32>
    %280 = vector.broadcast %254 : vector<1x32xf32> to vector<2x32xf32>
    %281 = arith.addf %279, %280 : vector<2x32xf32>
    %282 = arith.mulf %269, %281 : vector<2x32xf32>
    %283 = arith.addf %278, %282 : vector<2x32xf32>
    %284 = math.tanh %283 : vector<2x32xf32>
    %cst_58 = arith.constant 1.000000e+00 : f32
    %285 = vector.broadcast %cst_58 : f32 to vector<2x32xf32>
    %286 = arith.subf %285, %277 : vector<2x32xf32>
    %287 = arith.mulf %286, %284 : vector<2x32xf32>
    %288 = arith.mulf %277, %259 : vector<2x32xf32>
    %289 = arith.addf %287, %288 : vector<2x32xf32>
    %290 = vector.extract_strided_slice %257 {offsets = [2, 0], sizes = [2, 96], strides = [1, 1]} : vector<16x96xf32> to vector<2x96xf32>
    %cst_59 = arith.constant dense<0.000000e+00> : vector<2x96xf32>
    %291 = tpu.matmul %289, %252, %cst_59 {dimension_numbers = #tpu.dot_dimension_numbers<[1], [0], [0], [1], [0, 0, 1, 1], [], []>} : vector<2x32xf32>, vector<32x96xf32>, vector<2x96xf32> -> vector<2x96xf32>
    %292 = vector.extract_strided_slice %290 {offsets = [0, 0], sizes = [2, 32], strides = [1, 1]} : vector<2x96xf32> to vector<2x32xf32>
    %293 = vector.extract_strided_slice %291 {offsets = [0, 0], sizes = [2, 32], strides = [1, 1]} : vector<2x96xf32> to vector<2x32xf32>
    %294 = arith.addf %292, %293 : vector<2x32xf32>
    %295 = arith.negf %294 : vector<2x32xf32>
    %296 = math.exp %295 : vector<2x32xf32>
    %cst_60 = arith.constant 1.000000e+00 : f32
    %297 = vector.broadcast %cst_60 : f32 to vector<2x32xf32>
    %298 = arith.addf %297, %296 : vector<2x32xf32>
    %299 = arith.divf %297, %298 : vector<2x32xf32>
    %300 = vector.extract_strided_slice %290 {offsets = [0, 32], sizes = [2, 32], strides = [1, 1]} : vector<2x96xf32> to vector<2x32xf32>
    %301 = vector.extract_strided_slice %291 {offsets = [0, 32], sizes = [2, 32], strides = [1, 1]} : vector<2x96xf32> to vector<2x32xf32>
    %302 = arith.addf %300, %301 : vector<2x32xf32>
    %303 = arith.negf %302 : vector<2x32xf32>
    %304 = math.exp %303 : vector<2x32xf32>
    %cst_61 = arith.constant 1.000000e+00 : f32
    %305 = vector.broadcast %cst_61 : f32 to vector<2x32xf32>
    %306 = arith.addf %305, %304 : vector<2x32xf32>
    %307 = arith.divf %305, %306 : vector<2x32xf32>
    %308 = vector.extract_strided_slice %290 {offsets = [0, 64], sizes = [2, 32], strides = [1, 1]} : vector<2x96xf32> to vector<2x32xf32>
    %309 = vector.extract_strided_slice %291 {offsets = [0, 64], sizes = [2, 32], strides = [1, 1]} : vector<2x96xf32> to vector<2x32xf32>
    %310 = vector.broadcast %254 : vector<1x32xf32> to vector<2x32xf32>
    %311 = arith.addf %309, %310 : vector<2x32xf32>
    %312 = arith.mulf %299, %311 : vector<2x32xf32>
    %313 = arith.addf %308, %312 : vector<2x32xf32>
    %314 = math.tanh %313 : vector<2x32xf32>
    %cst_62 = arith.constant 1.000000e+00 : f32
    %315 = vector.broadcast %cst_62 : f32 to vector<2x32xf32>
    %316 = arith.subf %315, %307 : vector<2x32xf32>
    %317 = arith.mulf %316, %314 : vector<2x32xf32>
    %318 = arith.mulf %307, %289 : vector<2x32xf32>
    %319 = arith.addf %317, %318 : vector<2x32xf32>
    %320 = vector.extract_strided_slice %257 {offsets = [4, 0], sizes = [2, 96], strides = [1, 1]} : vector<16x96xf32> to vector<2x96xf32>
    %cst_63 = arith.constant dense<0.000000e+00> : vector<2x96xf32>
    %321 = tpu.matmul %319, %252, %cst_63 {dimension_numbers = #tpu.dot_dimension_numbers<[1], [0], [0], [1], [0, 0, 1, 1], [], []>} : vector<2x32xf32>, vector<32x96xf32>, vector<2x96xf32> -> vector<2x96xf32>
    %322 = vector.extract_strided_slice %320 {offsets = [0, 0], sizes = [2, 32], strides = [1, 1]} : vector<2x96xf32> to vector<2x32xf32>
    %323 = vector.extract_strided_slice %321 {offsets = [0, 0], sizes = [2, 32], strides = [1, 1]} : vector<2x96xf32> to vector<2x32xf32>
    %324 = arith.addf %322, %323 : vector<2x32xf32>
    %325 = arith.negf %324 : vector<2x32xf32>
    %326 = math.exp %325 : vector<2x32xf32>
    %cst_64 = arith.constant 1.000000e+00 : f32
    %327 = vector.broadcast %cst_64 : f32 to vector<2x32xf32>
    %328 = arith.addf %327, %326 : vector<2x32xf32>
    %329 = arith.divf %327, %328 : vector<2x32xf32>
    %330 = vector.extract_strided_slice %320 {offsets = [0, 32], sizes = [2, 32], strides = [1, 1]} : vector<2x96xf32> to vector<2x32xf32>
    %331 = vector.extract_strided_slice %321 {offsets = [0, 32], sizes = [2, 32], strides = [1, 1]} : vector<2x96xf32> to vector<2x32xf32>
    %332 = arith.addf %330, %331 : vector<2x32xf32>
    %333 = arith.negf %332 : vector<2x32xf32>
    %334 = math.exp %333 : vector<2x32xf32>
    %cst_65 = arith.constant 1.000000e+00 : f32
    %335 = vector.broadcast %cst_65 : f32 to vector<2x32xf32>
    %336 = arith.addf %335, %334 : vector<2x32xf32>
    %337 = arith.divf %335, %336 : vector<2x32xf32>
    %338 = vector.extract_strided_slice %320 {offsets = [0, 64], sizes = [2, 32], strides = [1, 1]} : vector<2x96xf32> to vector<2x32xf32>
    %339 = vector.extract_strided_slice %321 {offsets = [0, 64], sizes = [2, 32], strides = [1, 1]} : vector<2x96xf32> to vector<2x32xf32>
    %340 = vector.broadcast %254 : vector<1x32xf32> to vector<2x32xf32>
    %341 = arith.addf %339, %340 : vector<2x32xf32>
    %342 = arith.mulf %329, %341 : vector<2x32xf32>
    %343 = arith.addf %338, %342 : vector<2x32xf32>
    %344 = math.tanh %343 : vector<2x32xf32>
    %cst_66 = arith.constant 1.000000e+00 : f32
    %345 = vector.broadcast %cst_66 : f32 to vector<2x32xf32>
    %346 = arith.subf %345, %337 : vector<2x32xf32>
    %347 = arith.mulf %346, %344 : vector<2x32xf32>
    %348 = arith.mulf %337, %319 : vector<2x32xf32>
    %349 = arith.addf %347, %348 : vector<2x32xf32>
    %350 = vector.extract_strided_slice %257 {offsets = [6, 0], sizes = [2, 96], strides = [1, 1]} : vector<16x96xf32> to vector<2x96xf32>
    %cst_67 = arith.constant dense<0.000000e+00> : vector<2x96xf32>
    %351 = tpu.matmul %349, %252, %cst_67 {dimension_numbers = #tpu.dot_dimension_numbers<[1], [0], [0], [1], [0, 0, 1, 1], [], []>} : vector<2x32xf32>, vector<32x96xf32>, vector<2x96xf32> -> vector<2x96xf32>
    %352 = vector.extract_strided_slice %350 {offsets = [0, 0], sizes = [2, 32], strides = [1, 1]} : vector<2x96xf32> to vector<2x32xf32>
    %353 = vector.extract_strided_slice %351 {offsets = [0, 0], sizes = [2, 32], strides = [1, 1]} : vector<2x96xf32> to vector<2x32xf32>
    %354 = arith.addf %352, %353 : vector<2x32xf32>
    %355 = arith.negf %354 : vector<2x32xf32>
    %356 = math.exp %355 : vector<2x32xf32>
    %cst_68 = arith.constant 1.000000e+00 : f32
    %357 = vector.broadcast %cst_68 : f32 to vector<2x32xf32>
    %358 = arith.addf %357, %356 : vector<2x32xf32>
    %359 = arith.divf %357, %358 : vector<2x32xf32>
    %360 = vector.extract_strided_slice %350 {offsets = [0, 32], sizes = [2, 32], strides = [1, 1]} : vector<2x96xf32> to vector<2x32xf32>
    %361 = vector.extract_strided_slice %351 {offsets = [0, 32], sizes = [2, 32], strides = [1, 1]} : vector<2x96xf32> to vector<2x32xf32>
    %362 = arith.addf %360, %361 : vector<2x32xf32>
    %363 = arith.negf %362 : vector<2x32xf32>
    %364 = math.exp %363 : vector<2x32xf32>
    %cst_69 = arith.constant 1.000000e+00 : f32
    %365 = vector.broadcast %cst_69 : f32 to vector<2x32xf32>
    %366 = arith.addf %365, %364 : vector<2x32xf32>
    %367 = arith.divf %365, %366 : vector<2x32xf32>
    %368 = vector.extract_strided_slice %350 {offsets = [0, 64], sizes = [2, 32], strides = [1, 1]} : vector<2x96xf32> to vector<2x32xf32>
    %369 = vector.extract_strided_slice %351 {offsets = [0, 64], sizes = [2, 32], strides = [1, 1]} : vector<2x96xf32> to vector<2x32xf32>
    %370 = vector.broadcast %254 : vector<1x32xf32> to vector<2x32xf32>
    %371 = arith.addf %369, %370 : vector<2x32xf32>
    %372 = arith.mulf %359, %371 : vector<2x32xf32>
    %373 = arith.addf %368, %372 : vector<2x32xf32>
    %374 = math.tanh %373 : vector<2x32xf32>
    %cst_70 = arith.constant 1.000000e+00 : f32
    %375 = vector.broadcast %cst_70 : f32 to vector<2x32xf32>
    %376 = arith.subf %375, %367 : vector<2x32xf32>
    %377 = arith.mulf %376, %374 : vector<2x32xf32>
    %378 = arith.mulf %367, %349 : vector<2x32xf32>
    %379 = arith.addf %377, %378 : vector<2x32xf32>
    %380 = vector.extract_strided_slice %257 {offsets = [8, 0], sizes = [2, 96], strides = [1, 1]} : vector<16x96xf32> to vector<2x96xf32>
    %cst_71 = arith.constant dense<0.000000e+00> : vector<2x96xf32>
    %381 = tpu.matmul %379, %252, %cst_71 {dimension_numbers = #tpu.dot_dimension_numbers<[1], [0], [0], [1], [0, 0, 1, 1], [], []>} : vector<2x32xf32>, vector<32x96xf32>, vector<2x96xf32> -> vector<2x96xf32>
    %382 = vector.extract_strided_slice %380 {offsets = [0, 0], sizes = [2, 32], strides = [1, 1]} : vector<2x96xf32> to vector<2x32xf32>
    %383 = vector.extract_strided_slice %381 {offsets = [0, 0], sizes = [2, 32], strides = [1, 1]} : vector<2x96xf32> to vector<2x32xf32>
    %384 = arith.addf %382, %383 : vector<2x32xf32>
    %385 = arith.negf %384 : vector<2x32xf32>
    %386 = math.exp %385 : vector<2x32xf32>
    %cst_72 = arith.constant 1.000000e+00 : f32
    %387 = vector.broadcast %cst_72 : f32 to vector<2x32xf32>
    %388 = arith.addf %387, %386 : vector<2x32xf32>
    %389 = arith.divf %387, %388 : vector<2x32xf32>
    %390 = vector.extract_strided_slice %380 {offsets = [0, 32], sizes = [2, 32], strides = [1, 1]} : vector<2x96xf32> to vector<2x32xf32>
    %391 = vector.extract_strided_slice %381 {offsets = [0, 32], sizes = [2, 32], strides = [1, 1]} : vector<2x96xf32> to vector<2x32xf32>
    %392 = arith.addf %390, %391 : vector<2x32xf32>
    %393 = arith.negf %392 : vector<2x32xf32>
    %394 = math.exp %393 : vector<2x32xf32>
    %cst_73 = arith.constant 1.000000e+00 : f32
    %395 = vector.broadcast %cst_73 : f32 to vector<2x32xf32>
    %396 = arith.addf %395, %394 : vector<2x32xf32>
    %397 = arith.divf %395, %396 : vector<2x32xf32>
    %398 = vector.extract_strided_slice %380 {offsets = [0, 64], sizes = [2, 32], strides = [1, 1]} : vector<2x96xf32> to vector<2x32xf32>
    %399 = vector.extract_strided_slice %381 {offsets = [0, 64], sizes = [2, 32], strides = [1, 1]} : vector<2x96xf32> to vector<2x32xf32>
    %400 = vector.broadcast %254 : vector<1x32xf32> to vector<2x32xf32>
    %401 = arith.addf %399, %400 : vector<2x32xf32>
    %402 = arith.mulf %389, %401 : vector<2x32xf32>
    %403 = arith.addf %398, %402 : vector<2x32xf32>
    %404 = math.tanh %403 : vector<2x32xf32>
    %cst_74 = arith.constant 1.000000e+00 : f32
    %405 = vector.broadcast %cst_74 : f32 to vector<2x32xf32>
    %406 = arith.subf %405, %397 : vector<2x32xf32>
    %407 = arith.mulf %406, %404 : vector<2x32xf32>
    %408 = arith.mulf %397, %379 : vector<2x32xf32>
    %409 = arith.addf %407, %408 : vector<2x32xf32>
    %410 = vector.extract_strided_slice %257 {offsets = [10, 0], sizes = [2, 96], strides = [1, 1]} : vector<16x96xf32> to vector<2x96xf32>
    %cst_75 = arith.constant dense<0.000000e+00> : vector<2x96xf32>
    %411 = tpu.matmul %409, %252, %cst_75 {dimension_numbers = #tpu.dot_dimension_numbers<[1], [0], [0], [1], [0, 0, 1, 1], [], []>} : vector<2x32xf32>, vector<32x96xf32>, vector<2x96xf32> -> vector<2x96xf32>
    %412 = vector.extract_strided_slice %410 {offsets = [0, 0], sizes = [2, 32], strides = [1, 1]} : vector<2x96xf32> to vector<2x32xf32>
    %413 = vector.extract_strided_slice %411 {offsets = [0, 0], sizes = [2, 32], strides = [1, 1]} : vector<2x96xf32> to vector<2x32xf32>
    %414 = arith.addf %412, %413 : vector<2x32xf32>
    %415 = arith.negf %414 : vector<2x32xf32>
    %416 = math.exp %415 : vector<2x32xf32>
    %cst_76 = arith.constant 1.000000e+00 : f32
    %417 = vector.broadcast %cst_76 : f32 to vector<2x32xf32>
    %418 = arith.addf %417, %416 : vector<2x32xf32>
    %419 = arith.divf %417, %418 : vector<2x32xf32>
    %420 = vector.extract_strided_slice %410 {offsets = [0, 32], sizes = [2, 32], strides = [1, 1]} : vector<2x96xf32> to vector<2x32xf32>
    %421 = vector.extract_strided_slice %411 {offsets = [0, 32], sizes = [2, 32], strides = [1, 1]} : vector<2x96xf32> to vector<2x32xf32>
    %422 = arith.addf %420, %421 : vector<2x32xf32>
    %423 = arith.negf %422 : vector<2x32xf32>
    %424 = math.exp %423 : vector<2x32xf32>
    %cst_77 = arith.constant 1.000000e+00 : f32
    %425 = vector.broadcast %cst_77 : f32 to vector<2x32xf32>
    %426 = arith.addf %425, %424 : vector<2x32xf32>
    %427 = arith.divf %425, %426 : vector<2x32xf32>
    %428 = vector.extract_strided_slice %410 {offsets = [0, 64], sizes = [2, 32], strides = [1, 1]} : vector<2x96xf32> to vector<2x32xf32>
    %429 = vector.extract_strided_slice %411 {offsets = [0, 64], sizes = [2, 32], strides = [1, 1]} : vector<2x96xf32> to vector<2x32xf32>
    %430 = vector.broadcast %254 : vector<1x32xf32> to vector<2x32xf32>
    %431 = arith.addf %429, %430 : vector<2x32xf32>
    %432 = arith.mulf %419, %431 : vector<2x32xf32>
    %433 = arith.addf %428, %432 : vector<2x32xf32>
    %434 = math.tanh %433 : vector<2x32xf32>
    %cst_78 = arith.constant 1.000000e+00 : f32
    %435 = vector.broadcast %cst_78 : f32 to vector<2x32xf32>
    %436 = arith.subf %435, %427 : vector<2x32xf32>
    %437 = arith.mulf %436, %434 : vector<2x32xf32>
    %438 = arith.mulf %427, %409 : vector<2x32xf32>
    %439 = arith.addf %437, %438 : vector<2x32xf32>
    %440 = vector.extract_strided_slice %257 {offsets = [12, 0], sizes = [2, 96], strides = [1, 1]} : vector<16x96xf32> to vector<2x96xf32>
    %cst_79 = arith.constant dense<0.000000e+00> : vector<2x96xf32>
    %441 = tpu.matmul %439, %252, %cst_79 {dimension_numbers = #tpu.dot_dimension_numbers<[1], [0], [0], [1], [0, 0, 1, 1], [], []>} : vector<2x32xf32>, vector<32x96xf32>, vector<2x96xf32> -> vector<2x96xf32>
    %442 = vector.extract_strided_slice %440 {offsets = [0, 0], sizes = [2, 32], strides = [1, 1]} : vector<2x96xf32> to vector<2x32xf32>
    %443 = vector.extract_strided_slice %441 {offsets = [0, 0], sizes = [2, 32], strides = [1, 1]} : vector<2x96xf32> to vector<2x32xf32>
    %444 = arith.addf %442, %443 : vector<2x32xf32>
    %445 = arith.negf %444 : vector<2x32xf32>
    %446 = math.exp %445 : vector<2x32xf32>
    %cst_80 = arith.constant 1.000000e+00 : f32
    %447 = vector.broadcast %cst_80 : f32 to vector<2x32xf32>
    %448 = arith.addf %447, %446 : vector<2x32xf32>
    %449 = arith.divf %447, %448 : vector<2x32xf32>
    %450 = vector.extract_strided_slice %440 {offsets = [0, 32], sizes = [2, 32], strides = [1, 1]} : vector<2x96xf32> to vector<2x32xf32>
    %451 = vector.extract_strided_slice %441 {offsets = [0, 32], sizes = [2, 32], strides = [1, 1]} : vector<2x96xf32> to vector<2x32xf32>
    %452 = arith.addf %450, %451 : vector<2x32xf32>
    %453 = arith.negf %452 : vector<2x32xf32>
    %454 = math.exp %453 : vector<2x32xf32>
    %cst_81 = arith.constant 1.000000e+00 : f32
    %455 = vector.broadcast %cst_81 : f32 to vector<2x32xf32>
    %456 = arith.addf %455, %454 : vector<2x32xf32>
    %457 = arith.divf %455, %456 : vector<2x32xf32>
    %458 = vector.extract_strided_slice %440 {offsets = [0, 64], sizes = [2, 32], strides = [1, 1]} : vector<2x96xf32> to vector<2x32xf32>
    %459 = vector.extract_strided_slice %441 {offsets = [0, 64], sizes = [2, 32], strides = [1, 1]} : vector<2x96xf32> to vector<2x32xf32>
    %460 = vector.broadcast %254 : vector<1x32xf32> to vector<2x32xf32>
    %461 = arith.addf %459, %460 : vector<2x32xf32>
    %462 = arith.mulf %449, %461 : vector<2x32xf32>
    %463 = arith.addf %458, %462 : vector<2x32xf32>
    %464 = math.tanh %463 : vector<2x32xf32>
    %cst_82 = arith.constant 1.000000e+00 : f32
    %465 = vector.broadcast %cst_82 : f32 to vector<2x32xf32>
    %466 = arith.subf %465, %457 : vector<2x32xf32>
    %467 = arith.mulf %466, %464 : vector<2x32xf32>
    %468 = arith.mulf %457, %439 : vector<2x32xf32>
    %469 = arith.addf %467, %468 : vector<2x32xf32>
    %470 = vector.extract_strided_slice %257 {offsets = [14, 0], sizes = [2, 96], strides = [1, 1]} : vector<16x96xf32> to vector<2x96xf32>
    %cst_83 = arith.constant dense<0.000000e+00> : vector<2x96xf32>
    %471 = tpu.matmul %469, %252, %cst_83 {dimension_numbers = #tpu.dot_dimension_numbers<[1], [0], [0], [1], [0, 0, 1, 1], [], []>} : vector<2x32xf32>, vector<32x96xf32>, vector<2x96xf32> -> vector<2x96xf32>
    %472 = vector.extract_strided_slice %470 {offsets = [0, 0], sizes = [2, 32], strides = [1, 1]} : vector<2x96xf32> to vector<2x32xf32>
    %473 = vector.extract_strided_slice %471 {offsets = [0, 0], sizes = [2, 32], strides = [1, 1]} : vector<2x96xf32> to vector<2x32xf32>
    %474 = arith.addf %472, %473 : vector<2x32xf32>
    %475 = arith.negf %474 : vector<2x32xf32>
    %476 = math.exp %475 : vector<2x32xf32>
    %cst_84 = arith.constant 1.000000e+00 : f32
    %477 = vector.broadcast %cst_84 : f32 to vector<2x32xf32>
    %478 = arith.addf %477, %476 : vector<2x32xf32>
    %479 = arith.divf %477, %478 : vector<2x32xf32>
    %480 = vector.extract_strided_slice %470 {offsets = [0, 32], sizes = [2, 32], strides = [1, 1]} : vector<2x96xf32> to vector<2x32xf32>
    %481 = vector.extract_strided_slice %471 {offsets = [0, 32], sizes = [2, 32], strides = [1, 1]} : vector<2x96xf32> to vector<2x32xf32>
    %482 = arith.addf %480, %481 : vector<2x32xf32>
    %483 = arith.negf %482 : vector<2x32xf32>
    %484 = math.exp %483 : vector<2x32xf32>
    %cst_85 = arith.constant 1.000000e+00 : f32
    %485 = vector.broadcast %cst_85 : f32 to vector<2x32xf32>
    %486 = arith.addf %485, %484 : vector<2x32xf32>
    %487 = arith.divf %485, %486 : vector<2x32xf32>
    %488 = vector.extract_strided_slice %470 {offsets = [0, 64], sizes = [2, 32], strides = [1, 1]} : vector<2x96xf32> to vector<2x32xf32>
    %489 = vector.extract_strided_slice %471 {offsets = [0, 64], sizes = [2, 32], strides = [1, 1]} : vector<2x96xf32> to vector<2x32xf32>
    %490 = vector.broadcast %254 : vector<1x32xf32> to vector<2x32xf32>
    %491 = arith.addf %489, %490 : vector<2x32xf32>
    %492 = arith.mulf %479, %491 : vector<2x32xf32>
    %493 = arith.addf %488, %492 : vector<2x32xf32>
    %494 = math.tanh %493 : vector<2x32xf32>
    %cst_86 = arith.constant 1.000000e+00 : f32
    %495 = vector.broadcast %cst_86 : f32 to vector<2x32xf32>
    %496 = arith.subf %495, %487 : vector<2x32xf32>
    %497 = arith.mulf %496, %494 : vector<2x32xf32>
    %498 = arith.mulf %487, %469 : vector<2x32xf32>
    %499 = arith.addf %497, %498 : vector<2x32xf32>
    %500 = tpu.concatenate %289, %319, %349, %379, %409, %439, %469, %499 in 0 : vector<2x32xf32>, vector<2x32xf32>, vector<2x32xf32>, vector<2x32xf32>, vector<2x32xf32>, vector<2x32xf32>, vector<2x32xf32>, vector<2x32xf32> -> vector<16x32xf32>
    %501 = math.tanh %500 : vector<16x32xf32>
    %c0_87 = arith.constant 0 : index
    %c0_88 = arith.constant 0 : index
    %502 = vector.load %arg11[%c0_87, %c0_88] : memref<32x128xf32, #tpu.memory_space<vmem>>, vector<32x128xf32>
    %cst_89 = arith.constant dense<0.000000e+00> : vector<16x128xf32>
    %503 = tpu.matmul %501, %502, %cst_89 {dimension_numbers = #tpu.dot_dimension_numbers<[1], [0], [0], [1], [0, 0, 1, 1], [], []>} : vector<16x32xf32>, vector<32x128xf32>, vector<16x128xf32> -> vector<16x128xf32>
    %c0_90 = arith.constant 0 : index
    %c0_91 = arith.constant 0 : index
    %504 = vector.load %arg12[%c0_90, %c0_91] : memref<1x128xf32, #tpu.memory_space<vmem>>, vector<1x128xf32>
    %505 = vector.broadcast %504 : vector<1x128xf32> to vector<16x128xf32>
    %506 = arith.addf %503, %505 : vector<16x128xf32>
    %c0_92 = arith.constant 0 : index
    %c0_93 = arith.constant 0 : index
    %507 = vector.load %arg13[%c0_92, %c0_93] : memref<16x128xf32, #tpu.memory_space<vmem>>, vector<16x128xf32>
    tpu.vector_store %arg13[%c0_92, %c0_93], %506 {strides = array<i32>} : memref<16x128xf32, #tpu.memory_space<vmem>>, vector<16x128xf32>,
    return
  }
  func.func @transform_0(%arg0: i32) -> (i32, i32) {
    %c0_i32 = arith.constant 0 : i32
    %c0_i32_0 = arith.constant 0 : i32
    %c0_i32_1 = arith.constant 0 : i32
    return %c0_i32, %c0_i32_0 : i32, i32
  }
  func.func @transform_1(%arg0: i32) -> (i32, i32, i32) {
    %c0_i32 = arith.constant 0 : i32
    %c0_i32_0 = arith.constant 0 : i32
    %c0_i32_1 = arith.constant 0 : i32
    %c0_i32_2 = arith.constant 0 : i32
    return %c0_i32, %c0_i32_0, %c0_i32_1 : i32, i32, i32
  }
  func.func @transform_2(%arg0: i32) -> (i32, i32) {
    %c0_i32 = arith.constant 0 : i32
    %c0_i32_0 = arith.constant 0 : i32
    %c0_i32_1 = arith.constant 0 : i32
    return %c0_i32, %c0_i32_0 : i32, i32
  }
  func.func @transform_3(%arg0: i32) -> (i32, i32) {
    %c0_i32 = arith.constant 0 : i32
    %c0_i32_0 = arith.constant 0 : i32
    %c0_i32_1 = arith.constant 0 : i32
    return %c0_i32, %c0_i32_0 : i32, i32
  }
  func.func @transform_4(%arg0: i32) -> (i32, i32) {
    %c0_i32 = arith.constant 0 : i32
    %c0_i32_0 = arith.constant 0 : i32
    %c0_i32_1 = arith.constant 0 : i32
    return %c0_i32, %c0_i32_0 : i32, i32
  }
  func.func @transform_5(%arg0: i32) -> (i32, i32) {
    %c0_i32 = arith.constant 0 : i32
    %c0_i32_0 = arith.constant 0 : i32
    %c0_i32_1 = arith.constant 0 : i32
    return %c0_i32, %c0_i32_0 : i32, i32
  }
  func.func @transform_6(%arg0: i32) -> (i32, i32) {
    %c0_i32 = arith.constant 0 : i32
    %c0_i32_0 = arith.constant 0 : i32
    %c0_i32_1 = arith.constant 0 : i32
    return %c0_i32, %c0_i32_0 : i32, i32
  }
  func.func @transform_7(%arg0: i32) -> (i32, i32) {
    %c0_i32 = arith.constant 0 : i32
    %c0_i32_0 = arith.constant 0 : i32
    %c0_i32_1 = arith.constant 0 : i32
    return %c0_i32, %c0_i32_0 : i32, i32
  }
  func.func @transform_8(%arg0: i32) -> (i32, i32) {
    %c0_i32 = arith.constant 0 : i32
    %c0_i32_0 = arith.constant 0 : i32
    %c0_i32_1 = arith.constant 0 : i32
    return %c0_i32, %c0_i32_0 : i32, i32
  }
  func.func @transform_9(%arg0: i32) -> (i32, i32) {
    %c0_i32 = arith.constant 0 : i32
    %c0_i32_0 = arith.constant 0 : i32
    %c0_i32_1 = arith.constant 0 : i32
    return %c0_i32, %c0_i32_0 : i32, i32
  }
  func.func @transform_10(%arg0: i32) -> (i32, i32) {
    %c0_i32 = arith.constant 0 : i32
    %c0_i32_0 = arith.constant 0 : i32
    %c0_i32_1 = arith.constant 0 : i32
    return %c0_i32, %c0_i32_0 : i32, i32
  }
  func.func @transform_11(%arg0: i32) -> (i32, i32) {
    %c0_i32 = arith.constant 0 : i32
    %c0_i32_0 = arith.constant 0 : i32
    %c0_i32_1 = arith.constant 0 : i32
    return %c0_i32, %c0_i32_0 : i32, i32
  }
  func.func @transform_12(%arg0: i32) -> (i32, i32) {
    %c0_i32 = arith.constant 0 : i32
    %c0_i32_0 = arith.constant 0 : i32
    %c0_i32_1 = arith.constant 0 : i32
    return %c0_i32, %c0_i32_0 : i32, i32
  }
}

</mosaic_0001>

<llo_original>
// kernel: generator_forward.1
$region0: #{generator_forward.1}
  #allocation0 [shape = 'u32[]', space=smem, size = 0x4, offset = 0x4, fixed_abs, tag = 'smem constant byte address 0x4 - core index']
  #allocation1 [shape = 'u32[144,128]{1,0:T(1,128)}', space=vmem, size = 0x12000, scoped, tag = 'internal scratch']
  %s0 = inlined_call_operand.vmem [shape: f32[16,8], index: 0, kind: input, shape index: {}]
  %s1 = inlined_call_operand.hbm [shape: f32[2,2,32], index: 1, kind: input, shape index: {}]
  %s2 = inlined_call_operand.hbm [shape: f32[8,96], index: 2, kind: input, shape index: {}]
  %s3 = inlined_call_operand.vmem [shape: f32[32,96], index: 3, kind: input, shape index: {}]
  %s4 = inlined_call_operand.vmem [shape: f32[1,96], index: 4, kind: input, shape index: {}]
  %s5 = inlined_call_operand.vmem [shape: f32[1,32], index: 5, kind: input, shape index: {}]
  %s6 = inlined_call_operand.vmem [shape: f32[32,96], index: 6, kind: input, shape index: {}]
  %s7 = inlined_call_operand.hbm [shape: f32[32,96], index: 7, kind: input, shape index: {}]
  %s8 = inlined_call_operand.vmem [shape: f32[1,96], index: 8, kind: input, shape index: {}]
  %s9 = inlined_call_operand.vmem [shape: f32[1,32], index: 9, kind: input, shape index: {}]
  %s10 = inlined_call_operand.hbm [shape: f32[32,128], index: 10, kind: input, shape index: {}]
  %s11 = inlined_call_operand.hbm [shape: f32[1,128], index: 11, kind: input, shape index: {}]
  %s12 = inlined_call_operand.vmem [shape: f32[16,128], index: 12, kind: output, shape index: {}]
  %s13 = sld [smem:[#allocation0]]
  $region78: #{generator_forward.1} parent=0
    _
  %s15 = ssub.s32 1, %s13
  %s16 = scalar_select 0, %s15, %s13
  $region1: #{generator_forward.1} parent=0
    #allocation2 [shape = 'u8[2048]{0}', space=vmem, size = 0x800, scoped, tag = 'input window, operand 1, single buffered']
    #allocation3 [shape = 's32[1]{0}', space=sflag, size = 0x4, scoped, tag = 'scoped memory for generator_forward.1']
    #allocation4 [shape = 'u8[4096]{0}', space=vmem, size = 0x1000, scoped, tag = 'input window, operand 2, single buffered']
    #allocation5 [shape = 's32[1]{0}', space=sflag, size = 0x4, scoped, tag = 'scoped memory for generator_forward.1']
    #allocation6 [shape = 'u8[16384]{0}', space=vmem, size = 0x4000, scoped, tag = 'input window, operand 7, single buffered']
    #allocation7 [shape = 'u8[16384]{0}', space=vmem, size = 0x4000, scoped, tag = 'input window, operand 10, single buffered']
    #allocation8 [shape = 's32[1]{0}', space=sflag, size = 0x4, scoped, tag = 'scoped memory for generator_forward.1']
    #allocation9 [shape = 'u8[512]{0}', space=vmem, size = 0x400, scoped, tag = 'input window, operand 11, single buffered']
    %17 = vsyncpa [#allocation3], 0
    %18 = vsyncpa [#allocation5], 0
    %19 = vsyncpa [#allocation8], 0
    // Predicated region
    $region2: #{generator_forward.1} parent=1 // pred_check
      _
    $region3: #{generator_forward.1} parent=1 // pred_check_branch
      %21 = sbr.rel (0) target = $region5
    $region4: #{generator_forward.1} parent=1 // pred_region
      _
    $region5: #{generator_forward.1} parent=1 // pred_fallthru
      _
    // Predicated region
    $region6: #{generator_forward.1} parent=1 // pred_check
      _
    $region7: #{generator_forward.1} parent=1 // pred_check_branch
      %23 = sbr.rel (0) target = $region9
    $region8: #{generator_forward.1} parent=1 // pred_region
      %s25 = ssub.s32 64, 64
      %26 = vsyncadd [#allocation3], %s25
      %s27 = sshll.u32 [#allocation2], 4
      %s28 = int_to_ptr.vmem [resolvable:$true] %s27
      %33 = dma.hbm_to_vmem [thread:$0]  %s1, 64, %s28, [#allocation3], 32, 32, 2
    $region9: #{generator_forward.1} parent=1 // pred_fallthru
      _
    // Predicated region
    $region10: #{generator_forward.1} parent=1 // pred_check
      _
    $region11: #{generator_forward.1} parent=1 // pred_check_branch
      %35 = sbr.rel (0) target = $region13
    $region12: #{generator_forward.1} parent=1 // pred_region
      %s37 = ssub.s32 128, 128
      %38 = vsyncadd [#allocation5], %s37
      %s40 = sshll.u32 [#allocation4], 4
      %s41 = int_to_ptr.vmem [resolvable:$true] %s40
      %43 = dma.hbm_to_vmem [thread:$0]  %s2, 128, %s41, [#allocation5]
    $region13: #{generator_forward.1} parent=1 // pred_fallthru
      _
    // Predicated region
    $region14: #{generator_forward.1} parent=1 // pred_check
      _
    $region15: #{generator_forward.1} parent=1 // pred_check_branch
      %45 = sbr.rel (0) target = $region17
    $region16: #{generator_forward.1} parent=1 // pred_region
      _
    $region17: #{generator_forward.1} parent=1 // pred_fallthru
      _
    // Predicated region
    $region18: #{generator_forward.1} parent=1 // pred_check
      _
    $region19: #{generator_forward.1} parent=1 // pred_check_branch
      %47 = sbr.rel (0) target = $region21
    $region20: #{generator_forward.1} parent=1 // pred_region
      _
    $region21: #{generator_forward.1} parent=1 // pred_fallthru
      _
    // Predicated region
    $region22: #{generator_forward.1} parent=1 // pred_check
      _
    $region23: #{generator_forward.1} parent=1 // pred_check_branch
      %49 = sbr.rel (0) target = $region25
    $region24: #{generator_forward.1} parent=1 // pred_region
      _
    $region25: #{generator_forward.1} parent=1 // pred_fallthru
      _
    // Predicated region
    $region26: #{generator_forward.1} parent=1 // pred_check
      _
    $region27: #{generator_forward.1} parent=1 // pred_check_branch
      %51 = sbr.rel (0) target = $region29
    $region28: #{generator_forward.1} parent=1 // pred_region
      _
    $region29: #{generator_forward.1} parent=1 // pred_fallthru
      _
    // Predicated region
    $region30: #{generator_forward.1} parent=1 // pred_check
      _
    $region31: #{generator_forward.1} parent=1 // pred_check_branch
      %53 = sbr.rel (0) target = $region33
    $region32: #{generator_forward.1} parent=1 // pred_region
      %s55 = ssub.s32 512, 512
      %56 = vsyncadd [#allocation5], %s55
      %s57 = sshll.u32 [#allocation6], 4
      %s58 = int_to_ptr.vmem [resolvable:$true] %s57
      %63 = dma.hbm_to_vmem [thread:$0]  %s7, 512, %s58, [#allocation5], 128, 128, 8
    $region33: #{generator_forward.1} parent=1 // pred_fallthru
      _
    // Predicated region
    $region34: #{generator_forward.1} parent=1 // pred_check
      _
    $region35: #{generator_forward.1} parent=1 // pred_check_branch
      %65 = sbr.rel (0) target = $region37
    $region36: #{generator_forward.1} parent=1 // pred_region
      _
    $region37: #{generator_forward.1} parent=1 // pred_fallthru
      _
    // Predicated region
    $region38: #{generator_forward.1} parent=1 // pred_check
      _
    $region39: #{generator_forward.1} parent=1 // pred_check_branch
      %67 = sbr.rel (0) target = $region41
    $region40: #{generator_forward.1} parent=1 // pred_region
      _
    $region41: #{generator_forward.1} parent=1 // pred_fallthru
      _
    // Predicated region
    $region42: #{generator_forward.1} parent=1 // pred_check
      _
    $region43: #{generator_forward.1} parent=1 // pred_check_branch
      %69 = sbr.rel (0) target = $region45
    $region44: #{generator_forward.1} parent=1 // pred_region
      %s71 = ssub.s32 512, 512
      %72 = vsyncadd [#allocation8], %s71
      %s73 = sshll.u32 [#allocation7], 4
      %s74 = int_to_ptr.vmem [resolvable:$true] %s73
      %79 = dma.hbm_to_vmem [thread:$0]  %s10, 512, %s74, [#allocation8], 128, 128, 8
    $region45: #{generator_forward.1} parent=1 // pred_fallthru
      _
    // Predicated region
    $region46: #{generator_forward.1} parent=1 // pred_check
      _
    $region47: #{generator_forward.1} parent=1 // pred_check_branch
      %81 = sbr.rel (0) target = $region49
    $region48: #{generator_forward.1} parent=1 // pred_region
      %s83 = ssub.s32 16, 16
      %84 = vsyncadd [#allocation8], %s83
      %s86 = sshll.u32 [#allocation9], 4
      %s87 = int_to_ptr.vmem [resolvable:$true] %s86
      %89 = dma.hbm_to_vmem [thread:$0]  %s11, 16, %s87, [#allocation8]
    $region49: #{generator_forward.1} parent=1 // pred_fallthru
      _
    // Predicated region
    $region50: #{generator_forward.1} parent=1 // pred_check
      _
    $region51: #{generator_forward.1} parent=1 // pred_check_branch
      %91 = sbr.rel (0) target = $region53
    $region52: #{generator_forward.1} parent=1 // pred_region
      %92 = dma.done [#allocation3], 64
    $region53: #{generator_forward.1} parent=1 // pred_fallthru
      _
    // Predicated region
    $region54: #{generator_forward.1} parent=1 // pred_check
      _
    $region55: #{generator_forward.1} parent=1 // pred_check_branch
      %94 = sbr.rel (0) target = $region57
    $region56: #{generator_forward.1} parent=1 // pred_region
      %95 = dma.done [#allocation5], 128
    $region57: #{generator_forward.1} parent=1 // pred_fallthru
      _
    // Predicated region
    $region58: #{generator_forward.1} parent=1 // pred_check
      _
    $region59: #{generator_forward.1} parent=1 // pred_check_branch
      %97 = sbr.rel (0) target = $region61
    $region60: #{generator_forward.1} parent=1 // pred_region
      %98 = dma.done [#allocation5], 512
    $region61: #{generator_forward.1} parent=1 // pred_fallthru
      _
    // Predicated region
    $region62: #{generator_forward.1} parent=1 // pred_check
      _
    $region63: #{generator_forward.1} parent=1 // pred_check_branch
      %100 = sbr.rel (0) target = $region65
    $region64: #{generator_forward.1} parent=1 // pred_region
      %101 = dma.done [#allocation8], 512
    $region65: #{generator_forward.1} parent=1 // pred_fallthru
      _
    // Predicated region
    $region66: #{generator_forward.1} parent=1 // pred_check
      _
    $region67: #{generator_forward.1} parent=1 // pred_check_branch
      %103 = sbr.rel (0) target = $region69
    $region68: #{generator_forward.1} parent=1 // pred_region
      %104 = dma.done [#allocation8], 16
    $region69: #{generator_forward.1} parent=1 // pred_fallthru
      _
    %v105 = vld [vmem:[%s0] sm:$0xff]
    %v106 = vld [vmem:[%s0 + $0x8] sm:$0xff]
    %v107 = vld [vmem:[#allocation4] sm:$0xff]
    %v108 = vld [vmem:[%s3] sm:$0xff]
    %v109 = vld [vmem:[%s3 + $0x8] sm:$0xff]
    %v110 = vld [vmem:[%s3 + $0x10] sm:$0xff]
    %v111 = vld [vmem:[%s3 + $0x18] sm:$0xff]
    %v112 = vld [vmem:[%s4] sm:$0x1]
    %v113 = vld [vmem:[%s5] sm:$0x1]
    %v115 = vlaneseq
    %v116 = vshrl.u32 %v115, 7
    %v117 = vsub.s32 0, %v116
    %v118 = vrot.slane %v112, %v117
    %vm120 = vcmask 64512
    %v122 = vsel %vm120, %v105, 0
    %v125 = vsel %vm120, %v106, 0
    %127 = vmatprep.subr.mxu0 0.0
    %128 = vmatpush1.msra.mxu0 %v107
    %129 = vmatprep.subr.mxu0 0.0
    %130 = vmatpush1.msra.mxu0 0.0
    %131 = vmatprep.subr.mxu0 0.0
    %132 = vmatpush1.msra.mxu0 0.0
    %133 = vmatprep.subr.mxu0 0.0
    %134 = vmatpush1.msra.mxu0 0.0
    %135 = vmatprep.subr.mxu0 0.0
    %136 = vmatpush1.msra.mxu0 0.0
    %137 = vmatprep.subr.mxu0 0.0
    %138 = vmatpush1.msra.mxu0 0.0
    %139 = vmatprep.subr.mxu0 0.0
    %140 = vmatpush1.msra.mxu0 0.0
    %141 = vmatprep.subr.mxu0 0.0
    %142 = vmatpush1.msra.mxu0 0.0
    %143 = vmatprep.subr.mxu0 0.0
    %144 = vmatpush1.msra.mxu0 0.0
    %145 = vmatprep.subr.mxu0 0.0
    %146 = vmatpush1.msra.mxu0 0.0
    %147 = vmatprep.subr.mxu0 0.0
    %148 = vmatpush1.msra.mxu0 0.0
    %149 = vmatprep.subr.mxu0 0.0
    %150 = vmatpush1.msra.mxu0 0.0
    %151 = vmatprep.subr.mxu0 0.0
    %152 = vmatpush1.msra.mxu0 0.0
    %153 = vmatprep.subr.mxu0 0.0
    %154 = vmatpush1.msra.mxu0 0.0
    %155 = vmatprep.subr.mxu0 0.0
    %156 = vmatpush1.msra.mxu0 0.0
    %157 = vmatprep.subr.mxu0 0.0
    %158 = vmatpush1.msra.mxu0 0.0
    %159 = vmatprep.subr.mxu0 0.0
    %160 = vmatpush1.msra.mxu0 0.0
    %161 = vmatprep.subr.mxu0 0.0
    %162 = vmatpush1.msra.mxu0 0.0
    %163 = vmatprep.subr.mxu0 0.0
    %164 = vmatpush1.msra.mxu0 0.0
    %165 = vmatprep.subr.mxu0 0.0
    %166 = vmatpush1.msra.mxu0 0.0
    %167 = vmatprep.subr.mxu0 0.0
    %168 = vmatpush1.msra.mxu0 0.0
    %169 = vmatprep.subr.mxu0 0.0
    %170 = vmatpush1.msra.mxu0 0.0
    %171 = vmatprep.subr.mxu0 0.0
    %172 = vmatpush1.msra.mxu0 0.0
    %173 = vmatprep.subr.mxu0 0.0
    %174 = vmatpush1.msra.mxu0 0.0
    %175 = vmatprep.subr.mxu0 0.0
    %176 = vmatpush1.msra.mxu0 0.0
    %177 = vmatprep.subr.mxu0 0.0
    %178 = vmatpush1.msra.mxu0 0.0
    %179 = vmatprep.subr.mxu0 0.0
    %180 = vmatpush1.msra.mxu0 0.0
    %181 = vmatprep.subr.mxu0 0.0
    %182 = vmatpush1.msra.mxu0 0.0
    %183 = vmatprep.subr.mxu0 0.0
    %184 = vmatpush1.msra.mxu0 0.0
    %185 = vmatprep.subr.mxu0 0.0
    %186 = vmatpush1.msra.mxu0 0.0
    %187 = vmatprep.subr.mxu0 0.0
    %188 = vmatpush1.msra.mxu0 0.0
    %189 = vmatprep.subr.mxu0 0.0
    %190 = vmatpush1.msra.mxu0 0.0
    %191 = vmatprep.mubr.f32.mxu0 0.0
    %192 = vmatmul.mubr.f32.gmra.mrb[0].mxu0 %v122
    %v193 = vpop.f32.mrb[0].mxu0
    %v194 = vadd.f32 %v118, %v193
    %v195 = vpop.f32.mrb[0].mxu0
    %196 = vmatprep.mubr.f32.mxu0 0.0
    %197 = vmatmul.mubr.f32.gmra.mrb[0].mxu0 %v125
    %v198 = vpop.f32.mrb[0].mxu0
    %v199 = vadd.f32 %v118, %v198
    %v200 = vpop.f32.mrb[0].mxu0
    %201 = vdwg.mxu0
    %v202 = vld [vmem:[#allocation2] sm:$0x3]
    %vm203 = vcmask 261120
    %v205 = vsel %vm203, %v202, 0
    %207 = vmatprep.subr.mxu0 0.0
    %208 = vmatpush1.msra.mxu0 %v108
    %209 = vmatprep.subr.mxu0 0.0
    %210 = vmatpush1.msra.mxu0 %v109
    %211 = vmatprep.subr.mxu0 0.0
    %212 = vmatpush1.msra.mxu0 %v110
    %213 = vmatprep.subr.mxu0 0.0
    %214 = vmatpush1.msra.mxu0 %v111
    %215 = vmatprep.subr.mxu0 0.0
    %216 = vmatpush1.msra.mxu0 0.0
    %217 = vmatprep.subr.mxu0 0.0
    %218 = vmatpush1.msra.mxu0 0.0
    %219 = vmatprep.subr.mxu0 0.0
    %220 = vmatpush1.msra.mxu0 0.0
    %221 = vmatprep.subr.mxu0 0.0
    %222 = vmatpush1.msra.mxu0 0.0
    %223 = vmatprep.subr.mxu0 0.0
    %224 = vmatpush1.msra.mxu0 0.0
    %225 = vmatprep.subr.mxu0 0.0
    %226 = vmatpush1.msra.mxu0 0.0
    %227 = vmatprep.subr.mxu0 0.0
    %228 = vmatpush1.msra.mxu0 0.0
    %229 = vmatprep.subr.mxu0 0.0
    %230 = vmatpush1.msra.mxu0 0.0
    %231 = vmatprep.subr.mxu0 0.0
    %232 = vmatpush1.msra.mxu0 0.0
    %233 = vmatprep.subr.mxu0 0.0
    %234 = vmatpush1.msra.mxu0 0.0
    %235 = vmatprep.subr.mxu0 0.0
    %236 = vmatpush1.msra.mxu0 0.0
    %237 = vmatprep.subr.mxu0 0.0
    %238 = vmatpush1.msra.mxu0 0.0
    %239 = vmatprep.subr.mxu0 0.0
    %240 = vmatpush1.msra.mxu0 0.0
    %241 = vmatprep.subr.mxu0 0.0
    %242 = vmatpush1.msra.mxu0 0.0
    %243 = vmatprep.subr.mxu0 0.0
    %244 = vmatpush1.msra.mxu0 0.0
    %245 = vmatprep.subr.mxu0 0.0
    %246 = vmatpush1.msra.mxu0 0.0
    %247 = vmatprep.subr.mxu0 0.0
    %248 = vmatpush1.msra.mxu0 0.0
    %249 = vmatprep.subr.mxu0 0.0
    %250 = vmatpush1.msra.mxu0 0.0
    %251 = vmatprep.subr.mxu0 0.0
    %252 = vmatpush1.msra.mxu0 0.0
    %253 = vmatprep.subr.mxu0 0.0
    %254 = vmatpush1.msra.mxu0 0.0
    %255 = vmatprep.subr.mxu0 0.0
    %256 = vmatpush1.msra.mxu0 0.0
    %257 = vmatprep.subr.mxu0 0.0
    %258 = vmatpush1.msra.mxu0 0.0
    %259 = vmatprep.subr.mxu0 0.0
    %260 = vmatpush1.msra.mxu0 0.0
    %261 = vmatprep.subr.mxu0 0.0
    %262 = vmatpush1.msra.mxu0 0.0
    %263 = vmatprep.subr.mxu0 0.0
    %264 = vmatpush1.msra.mxu0 0.0
    %265 = vmatprep.subr.mxu0 0.0
    %266 = vmatpush1.msra.mxu0 0.0
    %267 = vmatprep.subr.mxu0 0.0
    %268 = vmatpush1.msra.mxu0 0.0
    %269 = vmatprep.subr.mxu0 0.0
    %270 = vmatpush1.msra.mxu0 0.0
    %271 = vmatprep.mubr.f32.mxu0 0.0
    %272 = vmatmul.mubr.f32.gmra.mrb[0].mxu0 %v205
    %v273 = vpop.f32.mrb[0].mxu0
    %v274 = vadd.f32 0.0, %v273
    %v275 = vpop.f32.mrb[0].mxu0
    %276 = vdwg.mxu0
    %v277 = vadd.f32 %v194, %v274
    %v278 = vxor.u32 %v277, 2147483648
    %v279 = vmul.f32 %v278, 1.442695
    %v280 = vpow.pop %v279
    %v281 = vadd.f32 %v280, 1.0
    %v282 = vrcp.pop %v281
    %v283 = vmul.f32 1.0, %v282
    %v285 = vlaneseq
    %v286 = vshrl.u32 %v285, 7
    %v287 = vsub.s32 0, %v286
    %v288 = vrot.slane %v113, %v287
    %289 = vrot.lane.b32.xlu0 %v288, 64
    %v290 = vpop.permute.xlu0 %289
    %v292 = vadd.f32 %v274, %v290
    %294 = vrot.lane.b32.xlu0 %v292, 64
    %v295 = vpop.permute.xlu0 %294
    %v297 = vmul.f32 %v283, %v295
    %299 = vrot.lane.b32.xlu0 %v297, 64
    %v300 = vpop.permute.xlu0 %299
    %v302 = vadd.f32 %v194, %v300
    %v303 = vtanh.pop %v302
    %v304 = vsub.f32 1.0, %v283
    %306 = vrot.lane.b32.xlu0 %v303, 96
    %v307 = vpop.permute.xlu0 %306
    %v309 = vmul.f32 %v304, %v307
    %310 = vrot.lane.b32.xlu0 %v202, 32
    %v311 = vpop.permute.xlu0 %310
    %v313 = vmul.f32 %v283, %v311
    %v314 = vadd.f32 %v309, %v313
    %316 = vrot.lane.b32.xlu0 %v314, 96
    %v317 = vpop.permute.xlu0 %316
    %v318 = vsel %vm203, %v317, 0
    %320 = vmatprep.subr.mxu0 0.0
    %321 = vmatpush1.msra.mxu0 %v108
    %322 = vmatprep.subr.mxu0 0.0
    %323 = vmatpush1.msra.mxu0 %v109
    %324 = vmatprep.subr.mxu0 0.0
    %325 = vmatpush1.msra.mxu0 %v110
    %326 = vmatprep.subr.mxu0 0.0
    %327 = vmatpush1.msra.mxu0 %v111
    %328 = vmatprep.subr.mxu0 0.0
    %329 = vmatpush1.msra.mxu0 0.0
    %330 = vmatprep.subr.mxu0 0.0
    %331 = vmatpush1.msra.mxu0 0.0
    %332 = vmatprep.subr.mxu0 0.0
    %333 = vmatpush1.msra.mxu0 0.0
    %334 = vmatprep.subr.mxu0 0.0
    %335 = vmatpush1.msra.mxu0 0.0
    %336 = vmatprep.subr.mxu0 0.0
    %337 = vmatpush1.msra.mxu0 0.0
    %338 = vmatprep.subr.mxu0 0.0
    %339 = vmatpush1.msra.mxu0 0.0
    %340 = vmatprep.subr.mxu0 0.0
    %341 = vmatpush1.msra.mxu0 0.0
    %342 = vmatprep.subr.mxu0 0.0
    %343 = vmatpush1.msra.mxu0 0.0
    %344 = vmatprep.subr.mxu0 0.0
    %345 = vmatpush1.msra.mxu0 0.0
    %346 = vmatprep.subr.mxu0 0.0
    %347 = vmatpush1.msra.mxu0 0.0
    %348 = vmatprep.subr.mxu0 0.0
    %349 = vmatpush1.msra.mxu0 0.0
    %350 = vmatprep.subr.mxu0 0.0
    %351 = vmatpush1.msra.mxu0 0.0
    %352 = vmatprep.subr.mxu0 0.0
    %353 = vmatpush1.msra.mxu0 0.0
    %354 = vmatprep.subr.mxu0 0.0
    %355 = vmatpush1.msra.mxu0 0.0
    %356 = vmatprep.subr.mxu0 0.0
    %357 = vmatpush1.msra.mxu0 0.0
    %358 = vmatprep.subr.mxu0 0.0
    %359 = vmatpush1.msra.mxu0 0.0
    %360 = vmatprep.subr.mxu0 0.0
    %361 = vmatpush1.msra.mxu0 0.0
    %362 = vmatprep.subr.mxu0 0.0
    %363 = vmatpush1.msra.mxu0 0.0
    %364 = vmatprep.subr.mxu0 0.0
    %365 = vmatpush1.msra.mxu0 0.0
    %366 = vmatprep.subr.mxu0 0.0
    %367 = vmatpush1.msra.mxu0 0.0
    %368 = vmatprep.subr.mxu0 0.0
    %369 = vmatpush1.msra.mxu0 0.0
    %370 = vmatprep.subr.mxu0 0.0
    %371 = vmatpush1.msra.mxu0 0.0
    %372 = vmatprep.subr.mxu0 0.0
    %373 = vmatpush1.msra.mxu0 0.0
    %374 = vmatprep.subr.mxu0 0.0
    %375 = vmatpush1.msra.mxu0 0.0
    %376 = vmatprep.subr.mxu0 0.0
    %377 = vmatpush1.msra.mxu0 0.0
    %378 = vmatprep.subr.mxu0 0.0
    %379 = vmatpush1.msra.mxu0 0.0
    %380 = vmatprep.subr.mxu0 0.0
    %381 = vmatpush1.msra.mxu0 0.0
    %382 = vmatprep.subr.mxu0 0.0
    %383 = vmatpush1.msra.mxu0 0.0
    %384 = vmatprep.mubr.f32.mxu0 0.0
    %385 = vmatmul.mubr.f32.gmra.mrb[0].mxu0 %v318
    %v386 = vpop.f32.mrb[0].mxu0
    %v387 = vadd.f32 0.0, %v386
    %v388 = vpop.f32.mrb[0].mxu0
    %389 = vdwg.mxu0
    %v391 = vrot.slane %v387, 6
    %v393 = vadd.f32 %v194, %v391
    %v394 = vxor.u32 %v393, 2147483648
    %v395 = vmul.f32 %v394, 1.442695
    %v396 = vpow.pop %v395
    %v397 = vadd.f32 %v396, 1.0
    %v398 = vrcp.pop %v397
    %v399 = vmul.f32 1.0, %v398
    %v400 = vadd.f32 %v387, %v290
    %v402 = vrot.slane %v400, 6
    %403 = vrot.lane.b32.xlu0 %v402, 64
    %v404 = vpop.permute.xlu0 %403
    %v406 = vmul.f32 %v399, %v404
    %408 = vrot.lane.b32.xlu0 %v406, 64
    %v409 = vpop.permute.xlu0 %408
    %v411 = vadd.f32 %v194, %v409
    %v412 = vtanh.pop %v411
    %v413 = vsub.f32 1.0, %v399
    %415 = vrot.lane.b32.xlu0 %v412, 96
    %v416 = vpop.permute.xlu0 %415
    %v418 = vmul.f32 %v413, %v416
    %v419 = vrot.slane %v314, 6
    %v421 = vmul.f32 %v399, %v419
    %v422 = vadd.f32 %v418, %v421
    %v424 = vrot.slane %v422, 2
    %425 = vrot.lane.b32.xlu0 %v424, 96
    %v426 = vpop.permute.xlu0 %425
    %v427 = vsel %vm203, %v426, 0
    %429 = vmatprep.subr.mxu0 0.0
    %430 = vmatpush1.msra.mxu0 %v108
    %431 = vmatprep.subr.mxu0 0.0
    %432 = vmatpush1.msra.mxu0 %v109
    %433 = vmatprep.subr.mxu0 0.0
    %434 = vmatpush1.msra.mxu0 %v110
    %435 = vmatprep.subr.mxu0 0.0
    %436 = vmatpush1.msra.mxu0 %v111
    %437 = vmatprep.subr.mxu0 0.0
    %438 = vmatpush1.msra.mxu0 0.0
    %439 = vmatprep.subr.mxu0 0.0
    %440 = vmatpush1.msra.mxu0 0.0
    %441 = vmatprep.subr.mxu0 0.0
    %442 = vmatpush1.msra.mxu0 0.0
    %443 = vmatprep.subr.mxu0 0.0
    %444 = vmatpush1.msra.mxu0 0.0
    %445 = vmatprep.subr.mxu0 0.0
    %446 = vmatpush1.msra.mxu0 0.0
    %447 = vmatprep.subr.mxu0 0.0
    %448 = vmatpush1.msra.mxu0 0.0
    %449 = vmatprep.subr.mxu0 0.0
    %450 = vmatpush1.msra.mxu0 0.0
    %451 = vmatprep.subr.mxu0 0.0
    %452 = vmatpush1.msra.mxu0 0.0
    %453 = vmatprep.subr.mxu0 0.0
    %454 = vmatpush1.msra.mxu0 0.0
    %455 = vmatprep.subr.mxu0 0.0
    %456 = vmatpush1.msra.mxu0 0.0
    %457 = vmatprep.subr.mxu0 0.0
    %458 = vmatpush1.msra.mxu0 0.0
    %459 = vmatprep.subr.mxu0 0.0
    %460 = vmatpush1.msra.mxu0 0.0
    %461 = vmatprep.subr.mxu0 0.0
    %462 = vmatpush1.msra.mxu0 0.0
    %463 = vmatprep.subr.mxu0 0.0
    %464 = vmatpush1.msra.mxu0 0.0
    %465 = vmatprep.subr.mxu0 0.0
    %466 = vmatpush1.msra.mxu0 0.0
    %467 = vmatprep.subr.mxu0 0.0
    %468 = vmatpush1.msra.mxu0 0.0
    %469 = vmatprep.subr.mxu0 0.0
    %470 = vmatpush1.msra.mxu0 0.0
    %471 = vmatprep.subr.mxu0 0.0
    %472 = vmatpush1.msra.mxu0 0.0
    %473 = vmatprep.subr.mxu0 0.0
    %474 = vmatpush1.msra.mxu0 0.0
    %475 = vmatprep.subr.mxu0 0.0
    %476 = vmatpush1.msra.mxu0 0.0
    %477 = vmatprep.subr.mxu0 0.0
    %478 = vmatpush1.msra.mxu0 0.0
    %479 = vmatprep.subr.mxu0 0.0
    %480 = vmatpush1.msra.mxu0 0.0
    %481 = vmatprep.subr.mxu0 0.0
    %482 = vmatpush1.msra.mxu0 0.0
    %483 = vmatprep.subr.mxu0 0.0
    %484 = vmatpush1.msra.mxu0 0.0
    %485 = vmatprep.subr.mxu0 0.0
    %486 = vmatpush1.msra.mxu0 0.0
    %487 = vmatprep.subr.mxu0 0.0
    %488 = vmatpush1.msra.mxu0 0.0
    %489 = vmatprep.subr.mxu0 0.0
    %490 = vmatpush1.msra.mxu0 0.0
    %491 = vmatprep.subr.mxu0 0.0
    %492 = vmatpush1.msra.mxu0 0.0
    %493 = vmatprep.mubr.f32.mxu0 0.0
    %494 = vmatmul.mubr.f32.gmra.mrb[0].mxu0 %v427
    %v495 = vpop.f32.mrb[0].mxu0
    %v496 = vadd.f32 0.0, %v495
    %v497 = vpop.f32.mrb[0].mxu0
    %498 = vdwg.mxu0
    %v500 = vrot.slane %v496, 4
    %v502 = vadd.f32 %v194, %v500
    %v503 = vxor.u32 %v502, 2147483648
    %v504 = vmul.f32 %v503, 1.442695
    %v505 = vpow.pop %v504
    %v506 = vadd.f32 %v505, 1.0
    %v507 = vrcp.pop %v506
    %v508 = vmul.f32 1.0, %v507
    %v509 = vadd.f32 %v496, %v290
    %v511 = vrot.slane %v509, 4
    %512 = vrot.lane.b32.xlu0 %v511, 64
    %v513 = vpop.permute.xlu0 %512
    %v515 = vmul.f32 %v508, %v513
    %517 = vrot.lane.b32.xlu0 %v515, 64
    %v518 = vpop.permute.xlu0 %517
    %v520 = vadd.f32 %v194, %v518
    %v521 = vtanh.pop %v520
    %v522 = vsub.f32 1.0, %v508
    %524 = vrot.lane.b32.xlu0 %v521, 96
    %v525 = vpop.permute.xlu0 %524
    %v527 = vmul.f32 %v522, %v525
    %v528 = vrot.slane %v422, 6
    %v530 = vmul.f32 %v508, %v528
    %v531 = vadd.f32 %v527, %v530
    %v533 = vrot.slane %v531, 4
    %534 = vrot.lane.b32.xlu0 %v533, 96
    %v535 = vpop.permute.xlu0 %534
    %v536 = vsel %vm203, %v535, 0
    %538 = vmatprep.subr.mxu0 0.0
    %539 = vmatpush1.msra.mxu0 %v108
    %540 = vmatprep.subr.mxu0 0.0
    %541 = vmatpush1.msra.mxu0 %v109
    %542 = vmatprep.subr.mxu0 0.0
    %543 = vmatpush1.msra.mxu0 %v110
    %544 = vmatprep.subr.mxu0 0.0
    %545 = vmatpush1.msra.mxu0 %v111
    %546 = vmatprep.subr.mxu0 0.0
    %547 = vmatpush1.msra.mxu0 0.0
    %548 = vmatprep.subr.mxu0 0.0
    %549 = vmatpush1.msra.mxu0 0.0
    %550 = vmatprep.subr.mxu0 0.0
    %551 = vmatpush1.msra.mxu0 0.0
    %552 = vmatprep.subr.mxu0 0.0
    %553 = vmatpush1.msra.mxu0 0.0
    %554 = vmatprep.subr.mxu0 0.0
    %555 = vmatpush1.msra.mxu0 0.0
    %556 = vmatprep.subr.mxu0 0.0
    %557 = vmatpush1.msra.mxu0 0.0
    %558 = vmatprep.subr.mxu0 0.0
    %559 = vmatpush1.msra.mxu0 0.0
    %560 = vmatprep.subr.mxu0 0.0
    %561 = vmatpush1.msra.mxu0 0.0
    %562 = vmatprep.subr.mxu0 0.0
    %563 = vmatpush1.msra.mxu0 0.0
    %564 = vmatprep.subr.mxu0 0.0
    %565 = vmatpush1.msra.mxu0 0.0
    %566 = vmatprep.subr.mxu0 0.0
    %567 = vmatpush1.msra.mxu0 0.0
    %568 = vmatprep.subr.mxu0 0.0
    %569 = vmatpush1.msra.mxu0 0.0
    %570 = vmatprep.subr.mxu0 0.0
    %571 = vmatpush1.msra.mxu0 0.0
    %572 = vmatprep.subr.mxu0 0.0
    %573 = vmatpush1.msra.mxu0 0.0
    %574 = vmatprep.subr.mxu0 0.0
    %575 = vmatpush1.msra.mxu0 0.0
    %576 = vmatprep.subr.mxu0 0.0
    %577 = vmatpush1.msra.mxu0 0.0
    %578 = vmatprep.subr.mxu0 0.0
    %579 = vmatpush1.msra.mxu0 0.0
    %580 = vmatprep.subr.mxu0 0.0
    %581 = vmatpush1.msra.mxu0 0.0
    %582 = vmatprep.subr.mxu0 0.0
    %583 = vmatpush1.msra.mxu0 0.0
    %584 = vmatprep.subr.mxu0 0.0
    %585 = vmatpush1.msra.mxu0 0.0
    %586 = vmatprep.subr.mxu0 0.0
    %587 = vmatpush1.msra.mxu0 0.0
    %588 = vmatprep.subr.mxu0 0.0
    %589 = vmatpush1.msra.mxu0 0.0
    %590 = vmatprep.subr.mxu0 0.0
    %591 = vmatpush1.msra.mxu0 0.0
    %592 = vmatprep.subr.mxu0 0.0
    %593 = vmatpush1.msra.mxu0 0.0
    %594 = vmatprep.subr.mxu0 0.0
    %595 = vmatpush1.msra.mxu0 0.0
    %596 = vmatprep.subr.mxu0 0.0
    %597 = vmatpush1.msra.mxu0 0.0
    %598 = vmatprep.subr.mxu0 0.0
    %599 = vmatpush1.msra.mxu0 0.0
    %600 = vmatprep.subr.mxu0 0.0
    %601 = vmatpush1.msra.mxu0 0.0
    %602 = vmatprep.mubr.f32.mxu0 0.0
    %603 = vmatmul.mubr.f32.gmra.mrb[0].mxu0 %v536
    %v604 = vpop.f32.mrb[0].mxu0
    %v605 = vadd.f32 0.0, %v604
    %v606 = vpop.f32.mrb[0].mxu0
    %607 = vdwg.mxu0
    %v609 = vrot.slane %v605, 2
    %v611 = vadd.f32 %v194, %v609
    %v612 = vxor.u32 %v611, 2147483648
    %v613 = vmul.f32 %v612, 1.442695
    %v614 = vpow.pop %v613
    %v615 = vadd.f32 %v614, 1.0
    %v616 = vrcp.pop %v615
    %v617 = vmul.f32 1.0, %v616
    %v618 = vadd.f32 %v605, %v290
    %v620 = vrot.slane %v618, 2
    %621 = vrot.lane.b32.xlu0 %v620, 64
    %v622 = vpop.permute.xlu0 %621
    %v624 = vmul.f32 %v617, %v622
    %626 = vrot.lane.b32.xlu0 %v624, 64
    %v627 = vpop.permute.xlu0 %626
    %v629 = vadd.f32 %v194, %v627
    %v630 = vtanh.pop %v629
    %v631 = vsub.f32 1.0, %v617
    %633 = vrot.lane.b32.xlu0 %v630, 96
    %v634 = vpop.permute.xlu0 %633
    %v636 = vmul.f32 %v631, %v634
    %v637 = vrot.slane %v531, 6
    %v639 = vmul.f32 %v617, %v637
    %v640 = vadd.f32 %v636, %v639
    %v642 = vrot.slane %v640, 6
    %643 = vrot.lane.b32.xlu0 %v642, 96
    %v644 = vpop.permute.xlu0 %643
    %v645 = vsel %vm203, %v644, 0
    %647 = vmatprep.subr.mxu0 0.0
    %648 = vmatpush1.msra.mxu0 %v108
    %649 = vmatprep.subr.mxu0 0.0
    %650 = vmatpush1.msra.mxu0 %v109
    %651 = vmatprep.subr.mxu0 0.0
    %652 = vmatpush1.msra.mxu0 %v110
    %653 = vmatprep.subr.mxu0 0.0
    %654 = vmatpush1.msra.mxu0 %v111
    %655 = vmatprep.subr.mxu0 0.0
    %656 = vmatpush1.msra.mxu0 0.0
    %657 = vmatprep.subr.mxu0 0.0
    %658 = vmatpush1.msra.mxu0 0.0
    %659 = vmatprep.subr.mxu0 0.0
    %660 = vmatpush1.msra.mxu0 0.0
    %661 = vmatprep.subr.mxu0 0.0
    %662 = vmatpush1.msra.mxu0 0.0
    %663 = vmatprep.subr.mxu0 0.0
    %664 = vmatpush1.msra.mxu0 0.0
    %665 = vmatprep.subr.mxu0 0.0
    %666 = vmatpush1.msra.mxu0 0.0
    %667 = vmatprep.subr.mxu0 0.0
    %668 = vmatpush1.msra.mxu0 0.0
    %669 = vmatprep.subr.mxu0 0.0
    %670 = vmatpush1.msra.mxu0 0.0
    %671 = vmatprep.subr.mxu0 0.0
    %672 = vmatpush1.msra.mxu0 0.0
    %673 = vmatprep.subr.mxu0 0.0
    %674 = vmatpush1.msra.mxu0 0.0
    %675 = vmatprep.subr.mxu0 0.0
    %676 = vmatpush1.msra.mxu0 0.0
    %677 = vmatprep.subr.mxu0 0.0
    %678 = vmatpush1.msra.mxu0 0.0
    %679 = vmatprep.subr.mxu0 0.0
    %680 = vmatpush1.msra.mxu0 0.0
    %681 = vmatprep.subr.mxu0 0.0
    %682 = vmatpush1.msra.mxu0 0.0
    %683 = vmatprep.subr.mxu0 0.0
    %684 = vmatpush1.msra.mxu0 0.0
    %685 = vmatprep.subr.mxu0 0.0
    %686 = vmatpush1.msra.mxu0 0.0
    %687 = vmatprep.subr.mxu0 0.0
    %688 = vmatpush1.msra.mxu0 0.0
    %689 = vmatprep.subr.mxu0 0.0
    %690 = vmatpush1.msra.mxu0 0.0
    %691 = vmatprep.subr.mxu0 0.0
    %692 = vmatpush1.msra.mxu0 0.0
    %693 = vmatprep.subr.mxu0 0.0
    %694 = vmatpush1.msra.mxu0 0.0
    %695 = vmatprep.subr.mxu0 0.0
    %696 = vmatpush1.msra.mxu0 0.0
    %697 = vmatprep.subr.mxu0 0.0
    %698 = vmatpush1.msra.mxu0 0.0
    %699 = vmatprep.subr.mxu0 0.0
    %700 = vmatpush1.msra.mxu0 0.0
    %701 = vmatprep.subr.mxu0 0.0
    %702 = vmatpush1.msra.mxu0 0.0
    %703 = vmatprep.subr.mxu0 0.0
    %704 = vmatpush1.msra.mxu0 0.0
    %705 = vmatprep.subr.mxu0 0.0
    %706 = vmatpush1.msra.mxu0 0.0
    %707 = vmatprep.subr.mxu0 0.0
    %708 = vmatpush1.msra.mxu0 0.0
    %709 = vmatprep.subr.mxu0 0.0
    %710 = vmatpush1.msra.mxu0 0.0
    %711 = vmatprep.mubr.f32.mxu0 0.0
    %712 = vmatmul.mubr.f32.gmra.mrb[0].mxu0 %v645
    %v713 = vpop.f32.mrb[0].mxu0
    %v714 = vadd.f32 0.0, %v713
    %v715 = vpop.f32.mrb[0].mxu0
    %716 = vdwg.mxu0
    %v717 = vadd.f32 %v199, %v714
    %v718 = vxor.u32 %v717, 2147483648
    %v719 = vmul.f32 %v718, 1.442695
    %v720 = vpow.pop %v719
    %v721 = vadd.f32 %v720, 1.0
    %v722 = vrcp.pop %v721
    %v723 = vmul.f32 1.0, %v722
    %v724 = vadd.f32 %v714, %v290
    %726 = vrot.lane.b32.xlu0 %v724, 64
    %v727 = vpop.permute.xlu0 %726
    %v729 = vmul.f32 %v723, %v727
    %731 = vrot.lane.b32.xlu0 %v729, 64
    %v732 = vpop.permute.xlu0 %731
    %v734 = vadd.f32 %v199, %v732
    %v735 = vtanh.pop %v734
    %v736 = vsub.f32 1.0, %v723
    %738 = vrot.lane.b32.xlu0 %v735, 96
    %v739 = vpop.permute.xlu0 %738
    %v741 = vmul.f32 %v736, %v739
    %v743 = vmul.f32 %v723, %v642
    %v744 = vadd.f32 %v741, %v743
    %746 = vrot.lane.b32.xlu0 %v744, 96
    %v747 = vpop.permute.xlu0 %746
    %v748 = vsel %vm203, %v747, 0
    %750 = vmatprep.subr.mxu0 0.0
    %751 = vmatpush1.msra.mxu0 %v108
    %752 = vmatprep.subr.mxu0 0.0
    %753 = vmatpush1.msra.mxu0 %v109
    %754 = vmatprep.subr.mxu0 0.0
    %755 = vmatpush1.msra.mxu0 %v110
    %756 = vmatprep.subr.mxu0 0.0
    %757 = vmatpush1.msra.mxu0 %v111
    %758 = vmatprep.subr.mxu0 0.0
    %759 = vmatpush1.msra.mxu0 0.0
    %760 = vmatprep.subr.mxu0 0.0
    %761 = vmatpush1.msra.mxu0 0.0
    %762 = vmatprep.subr.mxu0 0.0
    %763 = vmatpush1.msra.mxu0 0.0
    %764 = vmatprep.subr.mxu0 0.0
    %765 = vmatpush1.msra.mxu0 0.0
    %766 = vmatprep.subr.mxu0 0.0
    %767 = vmatpush1.msra.mxu0 0.0
    %768 = vmatprep.subr.mxu0 0.0
    %769 = vmatpush1.msra.mxu0 0.0
    %770 = vmatprep.subr.mxu0 0.0
    %771 = vmatpush1.msra.mxu0 0.0
    %772 = vmatprep.subr.mxu0 0.0
    %773 = vmatpush1.msra.mxu0 0.0
    %774 = vmatprep.subr.mxu0 0.0
    %775 = vmatpush1.msra.mxu0 0.0
    %776 = vmatprep.subr.mxu0 0.0
    %777 = vmatpush1.msra.mxu0 0.0
    %778 = vmatprep.subr.mxu0 0.0
    %779 = vmatpush1.msra.mxu0 0.0
    %780 = vmatprep.subr.mxu0 0.0
    %781 = vmatpush1.msra.mxu0 0.0
    %782 = vmatprep.subr.mxu0 0.0
    %783 = vmatpush1.msra.mxu0 0.0
    %784 = vmatprep.subr.mxu0 0.0
    %785 = vmatpush1.msra.mxu0 0.0
    %786 = vmatprep.subr.mxu0 0.0
    %787 = vmatpush1.msra.mxu0 0.0
    %788 = vmatprep.subr.mxu0 0.0
    %789 = vmatpush1.msra.mxu0 0.0
    %790 = vmatprep.subr.mxu0 0.0
    %791 = vmatpush1.msra.mxu0 0.0
    %792 = vmatprep.subr.mxu0 0.0
    %793 = vmatpush1.msra.mxu0 0.0
    %794 = vmatprep.subr.mxu0 0.0
    %795 = vmatpush1.msra.mxu0 0.0
    %796 = vmatprep.subr.mxu0 0.0
    %797 = vmatpush1.msra.mxu0 0.0
    %798 = vmatprep.subr.mxu0 0.0
    %799 = vmatpush1.msra.mxu0 0.0
    %800 = vmatprep.subr.mxu0 0.0
    %801 = vmatpush1.msra.mxu0 0.0
    %802 = vmatprep.subr.mxu0 0.0
    %803 = vmatpush1.msra.mxu0 0.0
    %804 = vmatprep.subr.mxu0 0.0
    %805 = vmatpush1.msra.mxu0 0.0
    %806 = vmatprep.subr.mxu0 0.0
    %807 = vmatpush1.msra.mxu0 0.0
    %808 = vmatprep.subr.mxu0 0.0
    %809 = vmatpush1.msra.mxu0 0.0
    %810 = vmatprep.subr.mxu0 0.0
    %811 = vmatpush1.msra.mxu0 0.0
    %812 = vmatprep.subr.mxu0 0.0
    %813 = vmatpush1.msra.mxu0 0.0
    %814 = vmatprep.mubr.f32.mxu0 0.0
    %815 = vmatmul.mubr.f32.gmra.mrb[0].mxu0 %v748
    %v816 = vpop.f32.mrb[0].mxu0
    %v817 = vadd.f32 0.0, %v816
    %v818 = vpop.f32.mrb[0].mxu0
    %819 = vdwg.mxu0
    %v821 = vrot.slane %v817, 6
    %v823 = vadd.f32 %v199, %v821
    %v824 = vxor.u32 %v823, 2147483648
    %v825 = vmul.f32 %v824, 1.442695
    %v826 = vpow.pop %v825
    %v827 = vadd.f32 %v826, 1.0
    %v828 = vrcp.pop %v827
    %v829 = vmul.f32 1.0, %v828
    %v830 = vadd.f32 %v817, %v290
    %v832 = vrot.slane %v830, 6
    %833 = vrot.lane.b32.xlu0 %v832, 64
    %v834 = vpop.permute.xlu0 %833
    %v836 = vmul.f32 %v829, %v834
    %838 = vrot.lane.b32.xlu0 %v836, 64
    %v839 = vpop.permute.xlu0 %838
    %v841 = vadd.f32 %v199, %v839
    %v842 = vtanh.pop %v841
    %v843 = vsub.f32 1.0, %v829
    %845 = vrot.lane.b32.xlu0 %v842, 96
    %v846 = vpop.permute.xlu0 %845
    %v848 = vmul.f32 %v843, %v846
    %v849 = vrot.slane %v744, 6
    %v851 = vmul.f32 %v829, %v849
    %v852 = vadd.f32 %v848, %v851
    %v854 = vrot.slane %v852, 2
    %855 = vrot.lane.b32.xlu0 %v854, 96
    %v856 = vpop.permute.xlu0 %855
    %v857 = vsel %vm203, %v856, 0
    %859 = vmatprep.subr.mxu0 0.0
    %860 = vmatpush1.msra.mxu0 %v108
    %861 = vmatprep.subr.mxu0 0.0
    %862 = vmatpush1.msra.mxu0 %v109
    %863 = vmatprep.subr.mxu0 0.0
    %864 = vmatpush1.msra.mxu0 %v110
    %865 = vmatprep.subr.mxu0 0.0
    %866 = vmatpush1.msra.mxu0 %v111
    %867 = vmatprep.subr.mxu0 0.0
    %868 = vmatpush1.msra.mxu0 0.0
    %869 = vmatprep.subr.mxu0 0.0
    %870 = vmatpush1.msra.mxu0 0.0
    %871 = vmatprep.subr.mxu0 0.0
    %872 = vmatpush1.msra.mxu0 0.0
    %873 = vmatprep.subr.mxu0 0.0
    %874 = vmatpush1.msra.mxu0 0.0
    %875 = vmatprep.subr.mxu0 0.0
    %876 = vmatpush1.msra.mxu0 0.0
    %877 = vmatprep.subr.mxu0 0.0
    %878 = vmatpush1.msra.mxu0 0.0
    %879 = vmatprep.subr.mxu0 0.0
    %880 = vmatpush1.msra.mxu0 0.0
    %881 = vmatprep.subr.mxu0 0.0
    %882 = vmatpush1.msra.mxu0 0.0
    %883 = vmatprep.subr.mxu0 0.0
    %884 = vmatpush1.msra.mxu0 0.0
    %885 = vmatprep.subr.mxu0 0.0
    %886 = vmatpush1.msra.mxu0 0.0
    %887 = vmatprep.subr.mxu0 0.0
    %888 = vmatpush1.msra.mxu0 0.0
    %889 = vmatprep.subr.mxu0 0.0
    %890 = vmatpush1.msra.mxu0 0.0
    %891 = vmatprep.subr.mxu0 0.0
    %892 = vmatpush1.msra.mxu0 0.0
    %893 = vmatprep.subr.mxu0 0.0
    %894 = vmatpush1.msra.mxu0 0.0
    %895 = vmatprep.subr.mxu0 0.0
    %896 = vmatpush1.msra.mxu0 0.0
    %897 = vmatprep.subr.mxu0 0.0
    %898 = vmatpush1.msra.mxu0 0.0
    %899 = vmatprep.subr.mxu0 0.0
    %900 = vmatpush1.msra.mxu0 0.0
    %901 = vmatprep.subr.mxu0 0.0
    %902 = vmatpush1.msra.mxu0 0.0
    %903 = vmatprep.subr.mxu0 0.0
    %904 = vmatpush1.msra.mxu0 0.0
    %905 = vmatprep.subr.mxu0 0.0
    %906 = vmatpush1.msra.mxu0 0.0
    %907 = vmatprep.subr.mxu0 0.0
    %908 = vmatpush1.msra.mxu0 0.0
    %909 = vmatprep.subr.mxu0 0.0
    %910 = vmatpush1.msra.mxu0 0.0
    %911 = vmatprep.subr.mxu0 0.0
    %912 = vmatpush1.msra.mxu0 0.0
    %913 = vmatprep.subr.mxu0 0.0
    %914 = vmatpush1.msra.mxu0 0.0
    %915 = vmatprep.subr.mxu0 0.0
    %916 = vmatpush1.msra.mxu0 0.0
    %917 = vmatprep.subr.mxu0 0.0
    %918 = vmatpush1.msra.mxu0 0.0
    %919 = vmatprep.subr.mxu0 0.0
    %920 = vmatpush1.msra.mxu0 0.0
    %921 = vmatprep.subr.mxu0 0.0
    %922 = vmatpush1.msra.mxu0 0.0
    %923 = vmatprep.mubr.f32.mxu0 0.0
    %924 = vmatmul.mubr.f32.gmra.mrb[0].mxu0 %v857
    %v925 = vpop.f32.mrb[0].mxu0
    %v926 = vadd.f32 0.0, %v925
    %v927 = vpop.f32.mrb[0].mxu0
    %928 = vdwg.mxu0
    %v930 = vrot.slane %v926, 4
    %v932 = vadd.f32 %v199, %v930
    %v933 = vxor.u32 %v932, 2147483648
    %v934 = vmul.f32 %v933, 1.442695
    %v935 = vpow.pop %v934
    %v936 = vadd.f32 %v935, 1.0
    %v937 = vrcp.pop %v936
    %v938 = vmul.f32 1.0, %v937
    %v939 = vadd.f32 %v926, %v290
    %v941 = vrot.slane %v939, 4
    %942 = vrot.lane.b32.xlu0 %v941, 64
    %v943 = vpop.permute.xlu0 %942
    %v945 = vmul.f32 %v938, %v943
    %947 = vrot.lane.b32.xlu0 %v945, 64
    %v948 = vpop.permute.xlu0 %947
    %v950 = vadd.f32 %v199, %v948
    %v951 = vtanh.pop %v950
    %v952 = vsub.f32 1.0, %v938
    %954 = vrot.lane.b32.xlu0 %v951, 96
    %v955 = vpop.permute.xlu0 %954
    %v957 = vmul.f32 %v952, %v955
    %v958 = vrot.slane %v852, 6
    %v960 = vmul.f32 %v938, %v958
    %v961 = vadd.f32 %v957, %v960
    %v963 = vrot.slane %v961, 4
    %964 = vrot.lane.b32.xlu0 %v963, 96
    %v965 = vpop.permute.xlu0 %964
    %v966 = vsel %vm203, %v965, 0
    %968 = vmatprep.subr.mxu0 0.0
    %969 = vmatpush1.msra.mxu0 %v108
    %970 = vmatprep.subr.mxu0 0.0
    %971 = vmatpush1.msra.mxu0 %v109
    %972 = vmatprep.subr.mxu0 0.0
    %973 = vmatpush1.msra.mxu0 %v110
    %974 = vmatprep.subr.mxu0 0.0
    %975 = vmatpush1.msra.mxu0 %v111
    %976 = vmatprep.subr.mxu0 0.0
    %977 = vmatpush1.msra.mxu0 0.0
    %978 = vmatprep.subr.mxu0 0.0
    %979 = vmatpush1.msra.mxu0 0.0
    %980 = vmatprep.subr.mxu0 0.0
    %981 = vmatpush1.msra.mxu0 0.0
    %982 = vmatprep.subr.mxu0 0.0
    %983 = vmatpush1.msra.mxu0 0.0
    %984 = vmatprep.subr.mxu0 0.0
    %985 = vmatpush1.msra.mxu0 0.0
    %986 = vmatprep.subr.mxu0 0.0
    %987 = vmatpush1.msra.mxu0 0.0
    %988 = vmatprep.subr.mxu0 0.0
    %989 = vmatpush1.msra.mxu0 0.0
    %990 = vmatprep.subr.mxu0 0.0
    %991 = vmatpush1.msra.mxu0 0.0
    %992 = vmatprep.subr.mxu0 0.0
    %993 = vmatpush1.msra.mxu0 0.0
    %994 = vmatprep.subr.mxu0 0.0
    %995 = vmatpush1.msra.mxu0 0.0
    %996 = vmatprep.subr.mxu0 0.0
    %997 = vmatpush1.msra.mxu0 0.0
    %998 = vmatprep.subr.mxu0 0.0
    %999 = vmatpush1.msra.mxu0 0.0
    %1000 = vmatprep.subr.mxu0 0.0
    %1001 = vmatpush1.msra.mxu0 0.0
    %1002 = vmatprep.subr.mxu0 0.0
    %1003 = vmatpush1.msra.mxu0 0.0
    %1004 = vmatprep.subr.mxu0 0.0
    %1005 = vmatpush1.msra.mxu0 0.0
    %1006 = vmatprep.subr.mxu0 0.0
    %1007 = vmatpush1.msra.mxu0 0.0
    %1008 = vmatprep.subr.mxu0 0.0
    %1009 = vmatpush1.msra.mxu0 0.0
    %1010 = vmatprep.subr.mxu0 0.0
    %1011 = vmatpush1.msra.mxu0 0.0
    %1012 = vmatprep.subr.mxu0 0.0
    %1013 = vmatpush1.msra.mxu0 0.0
    %1014 = vmatprep.subr.mxu0 0.0
    %1015 = vmatpush1.msra.mxu0 0.0
    %1016 = vmatprep.subr.mxu0 0.0
    %1017 = vmatpush1.msra.mxu0 0.0
    %1018 = vmatprep.subr.mxu0 0.0
    %1019 = vmatpush1.msra.mxu0 0.0
    %1020 = vmatprep.subr.mxu0 0.0
    %1021 = vmatpush1.msra.mxu0 0.0
    %1022 = vmatprep.subr.mxu0 0.0
    %1023 = vmatpush1.msra.mxu0 0.0
    %1024 = vmatprep.subr.mxu0 0.0
    %1025 = vmatpush1.msra.mxu0 0.0
    %1026 = vmatprep.subr.mxu0 0.0
    %1027 = vmatpush1.msra.mxu0 0.0
    %1028 = vmatprep.subr.mxu0 0.0
    %1029 = vmatpush1.msra.mxu0 0.0
    %1030 = vmatprep.subr.mxu0 0.0
    %1031 = vmatpush1.msra.mxu0 0.0
    %1032 = vmatprep.mubr.f32.mxu0 0.0
    %1033 = vmatmul.mubr.f32.gmra.mrb[0].mxu0 %v966
    %v1034 = vpop.f32.mrb[0].mxu0
    %v1035 = vadd.f32 0.0, %v1034
    %v1036 = vpop.f32.mrb[0].mxu0
    %1037 = vdwg.mxu0
    %v1039 = vrot.slane %v1035, 2
    %v1041 = vadd.f32 %v199, %v1039
    %v1042 = vxor.u32 %v1041, 2147483648
    %v1043 = vmul.f32 %v1042, 1.442695
    %v1044 = vpow.pop %v1043
    %v1045 = vadd.f32 %v1044, 1.0
    %v1046 = vrcp.pop %v1045
    %v1047 = vmul.f32 1.0, %v1046
    %v1048 = vadd.f32 %v1035, %v290
    %v1050 = vrot.slane %v1048, 2
    %1051 = vrot.lane.b32.xlu0 %v1050, 64
    %v1052 = vpop.permute.xlu0 %1051
    %v1054 = vmul.f32 %v1047, %v1052
    %1056 = vrot.lane.b32.xlu0 %v1054, 64
    %v1057 = vpop.permute.xlu0 %1056
    %v1059 = vadd.f32 %v199, %v1057
    %v1060 = vtanh.pop %v1059
    %v1061 = vsub.f32 1.0, %v1047
    %1063 = vrot.lane.b32.xlu0 %v1060, 96
    %v1064 = vpop.permute.xlu0 %1063
    %v1066 = vmul.f32 %v1061, %v1064
    %v1067 = vrot.slane %v961, 6
    %v1069 = vmul.f32 %v1047, %v1067
    %v1070 = vadd.f32 %v1066, %v1069
    %vm1071 = vcmask 1041408
    %v1072 = vsel %vm1071, %v314, %v422
    %vm1073 = vcmask 1043456
    %v1074 = vsel %vm1073, %v1072, %v531
    %vm1075 = vcmask 1045504
    %v1076 = vsel %vm1075, %v1074, %v640
    %v1077 = vsel %vm1071, %v744, %v852
    %v1078 = vsel %vm1073, %v1077, %v961
    %v1079 = vsel %vm1075, %v1078, %v1070
    %v1080 = vld [vmem:[%s6] sm:$0xff]
    %v1081 = vld [vmem:[%s6 + $0x8] sm:$0xff]
    %v1082 = vld [vmem:[%s6 + $0x10] sm:$0xff]
    %v1083 = vld [vmem:[%s6 + $0x18] sm:$0xff]
    %v1084 = vld [vmem:[#allocation6] sm:$0xff]
    %v1085 = vld [vmem:[#allocation6 + $0x8] sm:$0xff]
    %v1086 = vld [vmem:[#allocation6 + $0x10] sm:$0xff]
    %v1087 = vld [vmem:[#allocation6 + $0x18] sm:$0xff]
    %v1088 = vld [vmem:[%s8] sm:$0x1]
    %v1089 = vld [vmem:[%s9] sm:$0x1]
    %v1091 = vlaneseq
    %v1092 = vshrl.u32 %v1091, 7
    %v1093 = vsub.s32 0, %v1092
    %v1094 = vrot.slane %v1088, %v1093
    %1098 = vrot.lane.b32.xlu0 %v1076, 96
    %v1099 = vpop.permute.xlu0 %1098
    %1100 = vrot.lane.b32.xlu0 %v1079, 96
    %v1101 = vpop.permute.xlu0 %1100
    %v1102 = vsel %vm203, %v1099, 0
    %v1104 = vsel %vm203, %v1101, 0
    %1106 = vmatprep.subr.mxu0 0.0
    %1107 = vmatpush1.msra.mxu0 %v1080
    %1108 = vmatprep.subr.mxu0 0.0
    %1109 = vmatpush1.msra.mxu0 %v1081
    %1110 = vmatprep.subr.mxu0 0.0
    %1111 = vmatpush1.msra.mxu0 %v1082
    %1112 = vmatprep.subr.mxu0 0.0
    %1113 = vmatpush1.msra.mxu0 %v1083
    %1114 = vmatprep.subr.mxu0 0.0
    %1115 = vmatpush1.msra.mxu0 0.0
    %1116 = vmatprep.subr.mxu0 0.0
    %1117 = vmatpush1.msra.mxu0 0.0
    %1118 = vmatprep.subr.mxu0 0.0
    %1119 = vmatpush1.msra.mxu0 0.0
    %1120 = vmatprep.subr.mxu0 0.0
    %1121 = vmatpush1.msra.mxu0 0.0
    %1122 = vmatprep.subr.mxu0 0.0
    %1123 = vmatpush1.msra.mxu0 0.0
    %1124 = vmatprep.subr.mxu0 0.0
    %1125 = vmatpush1.msra.mxu0 0.0
    %1126 = vmatprep.subr.mxu0 0.0
    %1127 = vmatpush1.msra.mxu0 0.0
    %1128 = vmatprep.subr.mxu0 0.0
    %1129 = vmatpush1.msra.mxu0 0.0
    %1130 = vmatprep.subr.mxu0 0.0
    %1131 = vmatpush1.msra.mxu0 0.0
    %1132 = vmatprep.subr.mxu0 0.0
    %1133 = vmatpush1.msra.mxu0 0.0
    %1134 = vmatprep.subr.mxu0 0.0
    %1135 = vmatpush1.msra.mxu0 0.0
    %1136 = vmatprep.subr.mxu0 0.0
    %1137 = vmatpush1.msra.mxu0 0.0
    %1138 = vmatprep.subr.mxu0 0.0
    %1139 = vmatpush1.msra.mxu0 0.0
    %1140 = vmatprep.subr.mxu0 0.0
    %1141 = vmatpush1.msra.mxu0 0.0
    %1142 = vmatprep.subr.mxu0 0.0
    %1143 = vmatpush1.msra.mxu0 0.0
    %1144 = vmatprep.subr.mxu0 0.0
    %1145 = vmatpush1.msra.mxu0 0.0
    %1146 = vmatprep.subr.mxu0 0.0
    %1147 = vmatpush1.msra.mxu0 0.0
    %1148 = vmatprep.subr.mxu0 0.0
    %1149 = vmatpush1.msra.mxu0 0.0
    %1150 = vmatprep.subr.mxu0 0.0
    %1151 = vmatpush1.msra.mxu0 0.0
    %1152 = vmatprep.subr.mxu0 0.0
    %1153 = vmatpush1.msra.mxu0 0.0
    %1154 = vmatprep.subr.mxu0 0.0
    %1155 = vmatpush1.msra.mxu0 0.0
    %1156 = vmatprep.subr.mxu0 0.0
    %1157 = vmatpush1.msra.mxu0 0.0
    %1158 = vmatprep.subr.mxu0 0.0
    %1159 = vmatpush1.msra.mxu0 0.0
    %1160 = vmatprep.subr.mxu0 0.0
    %1161 = vmatpush1.msra.mxu0 0.0
    %1162 = vmatprep.subr.mxu0 0.0
    %1163 = vmatpush1.msra.mxu0 0.0
    %1164 = vmatprep.subr.mxu0 0.0
    %1165 = vmatpush1.msra.mxu0 0.0
    %1166 = vmatprep.subr.mxu0 0.0
    %1167 = vmatpush1.msra.mxu0 0.0
    %1168 = vmatprep.subr.mxu0 0.0
    %1169 = vmatpush1.msra.mxu0 0.0
    %1170 = vmatprep.mubr.f32.mxu0 0.0
    %1171 = vmatmul.mubr.f32.gmra.mrb[0].mxu0 %v1102
    %v1172 = vpop.f32.mrb[0].mxu0
    %v1173 = vadd.f32 %v1094, %v1172
    %v1174 = vpop.f32.mrb[0].mxu0
    %1175 = vmatprep.mubr.f32.mxu0 0.0
    %1176 = vmatmul.mubr.f32.gmra.mrb[0].mxu0 %v1104
    %v1177 = vpop.f32.mrb[0].mxu0
    %v1178 = vadd.f32 %v1094, %v1177
    %v1179 = vpop.f32.mrb[0].mxu0
    %1180 = vdwg.mxu0
    %s1181 = scalar_lea.vmem [#allocation2], 2
    %v1182 = vld [vmem:[%s1181] sm:$0x3]
    %v1184 = vsel %vm203, %v1182, 0
    %1186 = vmatprep.subr.mxu0 0.0
    %1187 = vmatpush1.msra.mxu0 %v1084
    %1188 = vmatprep.subr.mxu0 0.0
    %1189 = vmatpush1.msra.mxu0 %v1085
    %1190 = vmatprep.subr.mxu0 0.0
    %1191 = vmatpush1.msra.mxu0 %v1086
    %1192 = vmatprep.subr.mxu0 0.0
    %1193 = vmatpush1.msra.mxu0 %v1087
    %1194 = vmatprep.subr.mxu0 0.0
    %1195 = vmatpush1.msra.mxu0 0.0
    %1196 = vmatprep.subr.mxu0 0.0
    %1197 = vmatpush1.msra.mxu0 0.0
    %1198 = vmatprep.subr.mxu0 0.0
    %1199 = vmatpush1.msra.mxu0 0.0
    %1200 = vmatprep.subr.mxu0 0.0
    %1201 = vmatpush1.msra.mxu0 0.0
    %1202 = vmatprep.subr.mxu0 0.0
    %1203 = vmatpush1.msra.mxu0 0.0
    %1204 = vmatprep.subr.mxu0 0.0
    %1205 = vmatpush1.msra.mxu0 0.0
    %1206 = vmatprep.subr.mxu0 0.0
    %1207 = vmatpush1.msra.mxu0 0.0
    %1208 = vmatprep.subr.mxu0 0.0
    %1209 = vmatpush1.msra.mxu0 0.0
    %1210 = vmatprep.subr.mxu0 0.0
    %1211 = vmatpush1.msra.mxu0 0.0
    %1212 = vmatprep.subr.mxu0 0.0
    %1213 = vmatpush1.msra.mxu0 0.0
    %1214 = vmatprep.subr.mxu0 0.0
    %1215 = vmatpush1.msra.mxu0 0.0
    %1216 = vmatprep.subr.mxu0 0.0
    %1217 = vmatpush1.msra.mxu0 0.0
    %1218 = vmatprep.subr.mxu0 0.0
    %1219 = vmatpush1.msra.mxu0 0.0
    %1220 = vmatprep.subr.mxu0 0.0
    %1221 = vmatpush1.msra.mxu0 0.0
    %1222 = vmatprep.subr.mxu0 0.0
    %1223 = vmatpush1.msra.mxu0 0.0
    %1224 = vmatprep.subr.mxu0 0.0
    %1225 = vmatpush1.msra.mxu0 0.0
    %1226 = vmatprep.subr.mxu0 0.0
    %1227 = vmatpush1.msra.mxu0 0.0
    %1228 = vmatprep.subr.mxu0 0.0
    %1229 = vmatpush1.msra.mxu0 0.0
    %1230 = vmatprep.subr.mxu0 0.0
    %1231 = vmatpush1.msra.mxu0 0.0
    %1232 = vmatprep.subr.mxu0 0.0
    %1233 = vmatpush1.msra.mxu0 0.0
    %1234 = vmatprep.subr.mxu0 0.0
    %1235 = vmatpush1.msra.mxu0 0.0
    %1236 = vmatprep.subr.mxu0 0.0
    %1237 = vmatpush1.msra.mxu0 0.0
    %1238 = vmatprep.subr.mxu0 0.0
    %1239 = vmatpush1.msra.mxu0 0.0
    %1240 = vmatprep.subr.mxu0 0.0
    %1241 = vmatpush1.msra.mxu0 0.0
    %1242 = vmatprep.subr.mxu0 0.0
    %1243 = vmatpush1.msra.mxu0 0.0
    %1244 = vmatprep.subr.mxu0 0.0
    %1245 = vmatpush1.msra.mxu0 0.0
    %1246 = vmatprep.subr.mxu0 0.0
    %1247 = vmatpush1.msra.mxu0 0.0
    %1248 = vmatprep.subr.mxu0 0.0
    %1249 = vmatpush1.msra.mxu0 0.0
    %1250 = vmatprep.mubr.f32.mxu0 0.0
    %1251 = vmatmul.mubr.f32.gmra.mrb[0].mxu0 %v1184
    %v1252 = vpop.f32.mrb[0].mxu0
    %v1253 = vadd.f32 0.0, %v1252
    %v1254 = vpop.f32.mrb[0].mxu0
    %1255 = vdwg.mxu0
    %v1256 = vadd.f32 %v1173, %v1253
    %v1257 = vxor.u32 %v1256, 2147483648
    %v1258 = vmul.f32 %v1257, 1.442695
    %v1259 = vpow.pop %v1258
    %v1260 = vadd.f32 %v1259, 1.0
    %v1261 = vrcp.pop %v1260
    %v1262 = vmul.f32 1.0, %v1261
    %v1264 = vlaneseq
    %v1265 = vshrl.u32 %v1264, 7
    %v1266 = vsub.s32 0, %v1265
    %v1267 = vrot.slane %v1089, %v1266
    %1268 = vrot.lane.b32.xlu0 %v1267, 64
    %v1269 = vpop.permute.xlu0 %1268
    %v1271 = vadd.f32 %v1253, %v1269
    %1273 = vrot.lane.b32.xlu0 %v1271, 64
    %v1274 = vpop.permute.xlu0 %1273
    %v1276 = vmul.f32 %v1262, %v1274
    %1278 = vrot.lane.b32.xlu0 %v1276, 64
    %v1279 = vpop.permute.xlu0 %1278
    %v1281 = vadd.f32 %v1173, %v1279
    %v1282 = vtanh.pop %v1281
    %v1283 = vsub.f32 1.0, %v1262
    %1285 = vrot.lane.b32.xlu0 %v1282, 96
    %v1286 = vpop.permute.xlu0 %1285
    %v1288 = vmul.f32 %v1283, %v1286
    %1289 = vrot.lane.b32.xlu0 %v1182, 32
    %v1290 = vpop.permute.xlu0 %1289
    %v1292 = vmul.f32 %v1262, %v1290
    %v1293 = vadd.f32 %v1288, %v1292
    %1295 = vrot.lane.b32.xlu0 %v1293, 96
    %v1296 = vpop.permute.xlu0 %1295
    %v1297 = vsel %vm203, %v1296, 0
    %1299 = vmatprep.subr.mxu0 0.0
    %1300 = vmatpush1.msra.mxu0 %v1084
    %1301 = vmatprep.subr.mxu0 0.0
    %1302 = vmatpush1.msra.mxu0 %v1085
    %1303 = vmatprep.subr.mxu0 0.0
    %1304 = vmatpush1.msra.mxu0 %v1086
    %1305 = vmatprep.subr.mxu0 0.0
    %1306 = vmatpush1.msra.mxu0 %v1087
    %1307 = vmatprep.subr.mxu0 0.0
    %1308 = vmatpush1.msra.mxu0 0.0
    %1309 = vmatprep.subr.mxu0 0.0
    %1310 = vmatpush1.msra.mxu0 0.0
    %1311 = vmatprep.subr.mxu0 0.0
    %1312 = vmatpush1.msra.mxu0 0.0
    %1313 = vmatprep.subr.mxu0 0.0
    %1314 = vmatpush1.msra.mxu0 0.0
    %1315 = vmatprep.subr.mxu0 0.0
    %1316 = vmatpush1.msra.mxu0 0.0
    %1317 = vmatprep.subr.mxu0 0.0
    %1318 = vmatpush1.msra.mxu0 0.0
    %1319 = vmatprep.subr.mxu0 0.0
    %1320 = vmatpush1.msra.mxu0 0.0
    %1321 = vmatprep.subr.mxu0 0.0
    %1322 = vmatpush1.msra.mxu0 0.0
    %1323 = vmatprep.subr.mxu0 0.0
    %1324 = vmatpush1.msra.mxu0 0.0
    %1325 = vmatprep.subr.mxu0 0.0
    %1326 = vmatpush1.msra.mxu0 0.0
    %1327 = vmatprep.subr.mxu0 0.0
    %1328 = vmatpush1.msra.mxu0 0.0
    %1329 = vmatprep.subr.mxu0 0.0
    %1330 = vmatpush1.msra.mxu0 0.0
    %1331 = vmatprep.subr.mxu0 0.0
    %1332 = vmatpush1.msra.mxu0 0.0
    %1333 = vmatprep.subr.mxu0 0.0
    %1334 = vmatpush1.msra.mxu0 0.0
    %1335 = vmatprep.subr.mxu0 0.0
    %1336 = vmatpush1.msra.mxu0 0.0
    %1337 = vmatprep.subr.mxu0 0.0
    %1338 = vmatpush1.msra.mxu0 0.0
    %1339 = vmatprep.subr.mxu0 0.0
    %1340 = vmatpush1.msra.mxu0 0.0
    %1341 = vmatprep.subr.mxu0 0.0
    %1342 = vmatpush1.msra.mxu0 0.0
    %1343 = vmatprep.subr.mxu0 0.0
    %1344 = vmatpush1.msra.mxu0 0.0
    %1345 = vmatprep.subr.mxu0 0.0
    %1346 = vmatpush1.msra.mxu0 0.0
    %1347 = vmatprep.subr.mxu0 0.0
    %1348 = vmatpush1.msra.mxu0 0.0
    %1349 = vmatprep.subr.mxu0 0.0
    %1350 = vmatpush1.msra.mxu0 0.0
    %1351 = vmatprep.subr.mxu0 0.0
    %1352 = vmatpush1.msra.mxu0 0.0
    %1353 = vmatprep.subr.mxu0 0.0
    %1354 = vmatpush1.msra.mxu0 0.0
    %1355 = vmatprep.subr.mxu0 0.0
    %1356 = vmatpush1.msra.mxu0 0.0
    %1357 = vmatprep.subr.mxu0 0.0
    %1358 = vmatpush1.msra.mxu0 0.0
    %1359 = vmatprep.subr.mxu0 0.0
    %1360 = vmatpush1.msra.mxu0 0.0
    %1361 = vmatprep.subr.mxu0 0.0
    %1362 = vmatpush1.msra.mxu0 0.0
    %1363 = vmatprep.mubr.f32.mxu0 0.0
    %1364 = vmatmul.mubr.f32.gmra.mrb[0].mxu0 %v1297
    %v1365 = vpop.f32.mrb[0].mxu0
    %v1366 = vadd.f32 0.0, %v1365
    %v1367 = vpop.f32.mrb[0].mxu0
    %1368 = vdwg.mxu0
    %v1370 = vrot.slane %v1366, 6
    %v1372 = vadd.f32 %v1173, %v1370
    %v1373 = vxor.u32 %v1372, 2147483648
    %v1374 = vmul.f32 %v1373, 1.442695
    %v1375 = vpow.pop %v1374
    %v1376 = vadd.f32 %v1375, 1.0
    %v1377 = vrcp.pop %v1376
    %v1378 = vmul.f32 1.0, %v1377
    %v1379 = vadd.f32 %v1366, %v1269
    %v1381 = vrot.slane %v1379, 6
    %1382 = vrot.lane.b32.xlu0 %v1381, 64
    %v1383 = vpop.permute.xlu0 %1382
    %v1385 = vmul.f32 %v1378, %v1383
    %1387 = vrot.lane.b32.xlu0 %v1385, 64
    %v1388 = vpop.permute.xlu0 %1387
    %v1390 = vadd.f32 %v1173, %v1388
    %v1391 = vtanh.pop %v1390
    %v1392 = vsub.f32 1.0, %v1378
    %1394 = vrot.lane.b32.xlu0 %v1391, 96
    %v1395 = vpop.permute.xlu0 %1394
    %v1397 = vmul.f32 %v1392, %v1395
    %v1398 = vrot.slane %v1293, 6
    %v1400 = vmul.f32 %v1378, %v1398
    %v1401 = vadd.f32 %v1397, %v1400
    %v1403 = vrot.slane %v1401, 2
    %1404 = vrot.lane.b32.xlu0 %v1403, 96
    %v1405 = vpop.permute.xlu0 %1404
    %v1406 = vsel %vm203, %v1405, 0
    %1408 = vmatprep.subr.mxu0 0.0
    %1409 = vmatpush1.msra.mxu0 %v1084
    %1410 = vmatprep.subr.mxu0 0.0
    %1411 = vmatpush1.msra.mxu0 %v1085
    %1412 = vmatprep.subr.mxu0 0.0
    %1413 = vmatpush1.msra.mxu0 %v1086
    %1414 = vmatprep.subr.mxu0 0.0
    %1415 = vmatpush1.msra.mxu0 %v1087
    %1416 = vmatprep.subr.mxu0 0.0
    %1417 = vmatpush1.msra.mxu0 0.0
    %1418 = vmatprep.subr.mxu0 0.0
    %1419 = vmatpush1.msra.mxu0 0.0
    %1420 = vmatprep.subr.mxu0 0.0
    %1421 = vmatpush1.msra.mxu0 0.0
    %1422 = vmatprep.subr.mxu0 0.0
    %1423 = vmatpush1.msra.mxu0 0.0
    %1424 = vmatprep.subr.mxu0 0.0
    %1425 = vmatpush1.msra.mxu0 0.0
    %1426 = vmatprep.subr.mxu0 0.0
    %1427 = vmatpush1.msra.mxu0 0.0
    %1428 = vmatprep.subr.mxu0 0.0
    %1429 = vmatpush1.msra.mxu0 0.0
    %1430 = vmatprep.subr.mxu0 0.0
    %1431 = vmatpush1.msra.mxu0 0.0
    %1432 = vmatprep.subr.mxu0 0.0
    %1433 = vmatpush1.msra.mxu0 0.0
    %1434 = vmatprep.subr.mxu0 0.0
    %1435 = vmatpush1.msra.mxu0 0.0
    %1436 = vmatprep.subr.mxu0 0.0
    %1437 = vmatpush1.msra.mxu0 0.0
    %1438 = vmatprep.subr.mxu0 0.0
    %1439 = vmatpush1.msra.mxu0 0.0
    %1440 = vmatprep.subr.mxu0 0.0
    %1441 = vmatpush1.msra.mxu0 0.0
    %1442 = vmatprep.subr.mxu0 0.0
    %1443 = vmatpush1.msra.mxu0 0.0
    %1444 = vmatprep.subr.mxu0 0.0
    %1445 = vmatpush1.msra.mxu0 0.0
    %1446 = vmatprep.subr.mxu0 0.0
    %1447 = vmatpush1.msra.mxu0 0.0
    %1448 = vmatprep.subr.mxu0 0.0
    %1449 = vmatpush1.msra.mxu0 0.0
    %1450 = vmatprep.subr.mxu0 0.0
    %1451 = vmatpush1.msra.mxu0 0.0
    %1452 = vmatprep.subr.mxu0 0.0
    %1453 = vmatpush1.msra.mxu0 0.0
    %1454 = vmatprep.subr.mxu0 0.0
    %1455 = vmatpush1.msra.mxu0 0.0
    %1456 = vmatprep.subr.mxu0 0.0
    %1457 = vmatpush1.msra.mxu0 0.0
    %1458 = vmatprep.subr.mxu0 0.0
    %1459 = vmatpush1.msra.mxu0 0.0
    %1460 = vmatprep.subr.mxu0 0.0
    %1461 = vmatpush1.msra.mxu0 0.0
    %1462 = vmatprep.subr.mxu0 0.0
    %1463 = vmatpush1.msra.mxu0 0.0
    %1464 = vmatprep.subr.mxu0 0.0
    %1465 = vmatpush1.msra.mxu0 0.0
    %1466 = vmatprep.subr.mxu0 0.0
    %1467 = vmatpush1.msra.mxu0 0.0
    %1468 = vmatprep.subr.mxu0 0.0
    %1469 = vmatpush1.msra.mxu0 0.0
    %1470 = vmatprep.subr.mxu0 0.0
    %1471 = vmatpush1.msra.mxu0 0.0
    %1472 = vmatprep.mubr.f32.mxu0 0.0
    %1473 = vmatmul.mubr.f32.gmra.mrb[0].mxu0 %v1406
    %v1474 = vpop.f32.mrb[0].mxu0
    %v1475 = vadd.f32 0.0, %v1474
    %v1476 = vpop.f32.mrb[0].mxu0
    %1477 = vdwg.mxu0
    %v1479 = vrot.slane %v1475, 4
    %v1481 = vadd.f32 %v1173, %v1479
    %v1482 = vxor.u32 %v1481, 2147483648
    %v1483 = vmul.f32 %v1482, 1.442695
    %v1484 = vpow.pop %v1483
    %v1485 = vadd.f32 %v1484, 1.0
    %v1486 = vrcp.pop %v1485
    %v1487 = vmul.f32 1.0, %v1486
    %v1488 = vadd.f32 %v1475, %v1269
    %v1490 = vrot.slane %v1488, 4
    %1491 = vrot.lane.b32.xlu0 %v1490, 64
    %v1492 = vpop.permute.xlu0 %1491
    %v1494 = vmul.f32 %v1487, %v1492
    %1496 = vrot.lane.b32.xlu0 %v1494, 64
    %v1497 = vpop.permute.xlu0 %1496
    %v1499 = vadd.f32 %v1173, %v1497
    %v1500 = vtanh.pop %v1499
    %v1501 = vsub.f32 1.0, %v1487
    %1503 = vrot.lane.b32.xlu0 %v1500, 96
    %v1504 = vpop.permute.xlu0 %1503
    %v1506 = vmul.f32 %v1501, %v1504
    %v1507 = vrot.slane %v1401, 6
    %v1509 = vmul.f32 %v1487, %v1507
    %v1510 = vadd.f32 %v1506, %v1509
    %v1512 = vrot.slane %v1510, 4
    %1513 = vrot.lane.b32.xlu0 %v1512, 96
    %v1514 = vpop.permute.xlu0 %1513
    %v1515 = vsel %vm203, %v1514, 0
    %1517 = vmatprep.subr.mxu0 0.0
    %1518 = vmatpush1.msra.mxu0 %v1084
    %1519 = vmatprep.subr.mxu0 0.0
    %1520 = vmatpush1.msra.mxu0 %v1085
    %1521 = vmatprep.subr.mxu0 0.0
    %1522 = vmatpush1.msra.mxu0 %v1086
    %1523 = vmatprep.subr.mxu0 0.0
    %1524 = vmatpush1.msra.mxu0 %v1087
    %1525 = vmatprep.subr.mxu0 0.0
    %1526 = vmatpush1.msra.mxu0 0.0
    %1527 = vmatprep.subr.mxu0 0.0
    %1528 = vmatpush1.msra.mxu0 0.0
    %1529 = vmatprep.subr.mxu0 0.0
    %1530 = vmatpush1.msra.mxu0 0.0
    %1531 = vmatprep.subr.mxu0 0.0
    %1532 = vmatpush1.msra.mxu0 0.0
    %1533 = vmatprep.subr.mxu0 0.0
    %1534 = vmatpush1.msra.mxu0 0.0
    %1535 = vmatprep.subr.mxu0 0.0
    %1536 = vmatpush1.msra.mxu0 0.0
    %1537 = vmatprep.subr.mxu0 0.0
    %1538 = vmatpush1.msra.mxu0 0.0
    %1539 = vmatprep.subr.mxu0 0.0
    %1540 = vmatpush1.msra.mxu0 0.0
    %1541 = vmatprep.subr.mxu0 0.0
    %1542 = vmatpush1.msra.mxu0 0.0
    %1543 = vmatprep.subr.mxu0 0.0
    %1544 = vmatpush1.msra.mxu0 0.0
    %1545 = vmatprep.subr.mxu0 0.0
    %1546 = vmatpush1.msra.mxu0 0.0
    %1547 = vmatprep.subr.mxu0 0.0
    %1548 = vmatpush1.msra.mxu0 0.0
    %1549 = vmatprep.subr.mxu0 0.0
    %1550 = vmatpush1.msra.mxu0 0.0
    %1551 = vmatprep.subr.mxu0 0.0
    %1552 = vmatpush1.msra.mxu0 0.0
    %1553 = vmatprep.subr.mxu0 0.0
    %1554 = vmatpush1.msra.mxu0 0.0
    %1555 = vmatprep.subr.mxu0 0.0
    %1556 = vmatpush1.msra.mxu0 0.0
    %1557 = vmatprep.subr.mxu0 0.0
    %1558 = vmatpush1.msra.mxu0 0.0
    %1559 = vmatprep.subr.mxu0 0.0
    %1560 = vmatpush1.msra.mxu0 0.0
    %1561 = vmatprep.subr.mxu0 0.0
    %1562 = vmatpush1.msra.mxu0 0.0
    %1563 = vmatprep.subr.mxu0 0.0
    %1564 = vmatpush1.msra.mxu0 0.0
    %1565 = vmatprep.subr.mxu0 0.0
    %1566 = vmatpush1.msra.mxu0 0.0
    %1567 = vmatprep.subr.mxu0 0.0
    %1568 = vmatpush1.msra.mxu0 0.0
    %1569 = vmatprep.subr.mxu0 0.0
    %1570 = vmatpush1.msra.mxu0 0.0
    %1571 = vmatprep.subr.mxu0 0.0
    %1572 = vmatpush1.msra.mxu0 0.0
    %1573 = vmatprep.subr.mxu0 0.0
    %1574 = vmatpush1.msra.mxu0 0.0
    %1575 = vmatprep.subr.mxu0 0.0
    %1576 = vmatpush1.msra.mxu0 0.0
    %1577 = vmatprep.subr.mxu0 0.0
    %1578 = vmatpush1.msra.mxu0 0.0
    %1579 = vmatprep.subr.mxu0 0.0
    %1580 = vmatpush1.msra.mxu0 0.0
    %1581 = vmatprep.mubr.f32.mxu0 0.0
    %1582 = vmatmul.mubr.f32.gmra.mrb[0].mxu0 %v1515
    %v1583 = vpop.f32.mrb[0].mxu0
    %v1584 = vadd.f32 0.0, %v1583
    %v1585 = vpop.f32.mrb[0].mxu0
    %1586 = vdwg.mxu0
    %v1588 = vrot.slane %v1584, 2
    %v1590 = vadd.f32 %v1173, %v1588
    %v1591 = vxor.u32 %v1590, 2147483648
    %v1592 = vmul.f32 %v1591, 1.442695
    %v1593 = vpow.pop %v1592
    %v1594 = vadd.f32 %v1593, 1.0
    %v1595 = vrcp.pop %v1594
    %v1596 = vmul.f32 1.0, %v1595
    %v1597 = vadd.f32 %v1584, %v1269
    %v1599 = vrot.slane %v1597, 2
    %1600 = vrot.lane.b32.xlu0 %v1599, 64
    %v1601 = vpop.permute.xlu0 %1600
    %v1603 = vmul.f32 %v1596, %v1601
    %1605 = vrot.lane.b32.xlu0 %v1603, 64
    %v1606 = vpop.permute.xlu0 %1605
    %v1608 = vadd.f32 %v1173, %v1606
    %v1609 = vtanh.pop %v1608
    %v1610 = vsub.f32 1.0, %v1596
    %1612 = vrot.lane.b32.xlu0 %v1609, 96
    %v1613 = vpop.permute.xlu0 %1612
    %v1615 = vmul.f32 %v1610, %v1613
    %v1616 = vrot.slane %v1510, 6
    %v1618 = vmul.f32 %v1596, %v1616
    %v1619 = vadd.f32 %v1615, %v1618
    %v1621 = vrot.slane %v1619, 6
    %1622 = vrot.lane.b32.xlu0 %v1621, 96
    %v1623 = vpop.permute.xlu0 %1622
    %v1624 = vsel %vm203, %v1623, 0
    %1626 = vmatprep.subr.mxu0 0.0
    %1627 = vmatpush1.msra.mxu0 %v1084
    %1628 = vmatprep.subr.mxu0 0.0
    %1629 = vmatpush1.msra.mxu0 %v1085
    %1630 = vmatprep.subr.mxu0 0.0
    %1631 = vmatpush1.msra.mxu0 %v1086
    %1632 = vmatprep.subr.mxu0 0.0
    %1633 = vmatpush1.msra.mxu0 %v1087
    %1634 = vmatprep.subr.mxu0 0.0
    %1635 = vmatpush1.msra.mxu0 0.0
    %1636 = vmatprep.subr.mxu0 0.0
    %1637 = vmatpush1.msra.mxu0 0.0
    %1638 = vmatprep.subr.mxu0 0.0
    %1639 = vmatpush1.msra.mxu0 0.0
    %1640 = vmatprep.subr.mxu0 0.0
    %1641 = vmatpush1.msra.mxu0 0.0
    %1642 = vmatprep.subr.mxu0 0.0
    %1643 = vmatpush1.msra.mxu0 0.0
    %1644 = vmatprep.subr.mxu0 0.0
    %1645 = vmatpush1.msra.mxu0 0.0
    %1646 = vmatprep.subr.mxu0 0.0
    %1647 = vmatpush1.msra.mxu0 0.0
    %1648 = vmatprep.subr.mxu0 0.0
    %1649 = vmatpush1.msra.mxu0 0.0
    %1650 = vmatprep.subr.mxu0 0.0
    %1651 = vmatpush1.msra.mxu0 0.0
    %1652 = vmatprep.subr.mxu0 0.0
    %1653 = vmatpush1.msra.mxu0 0.0
    %1654 = vmatprep.subr.mxu0 0.0
    %1655 = vmatpush1.msra.mxu0 0.0
    %1656 = vmatprep.subr.mxu0 0.0
    %1657 = vmatpush1.msra.mxu0 0.0
    %1658 = vmatprep.subr.mxu0 0.0
    %1659 = vmatpush1.msra.mxu0 0.0
    %1660 = vmatprep.subr.mxu0 0.0
    %1661 = vmatpush1.msra.mxu0 0.0
    %1662 = vmatprep.subr.mxu0 0.0
    %1663 = vmatpush1.msra.mxu0 0.0
    %1664 = vmatprep.subr.mxu0 0.0
    %1665 = vmatpush1.msra.mxu0 0.0
    %1666 = vmatprep.subr.mxu0 0.0
    %1667 = vmatpush1.msra.mxu0 0.0
    %1668 = vmatprep.subr.mxu0 0.0
    %1669 = vmatpush1.msra.mxu0 0.0
    %1670 = vmatprep.subr.mxu0 0.0
    %1671 = vmatpush1.msra.mxu0 0.0
    %1672 = vmatprep.subr.mxu0 0.0
    %1673 = vmatpush1.msra.mxu0 0.0
    %1674 = vmatprep.subr.mxu0 0.0
    %1675 = vmatpush1.msra.mxu0 0.0
    %1676 = vmatprep.subr.mxu0 0.0
    %1677 = vmatpush1.msra.mxu0 0.0
    %1678 = vmatprep.subr.mxu0 0.0
    %1679 = vmatpush1.msra.mxu0 0.0
    %1680 = vmatprep.subr.mxu0 0.0
    %1681 = vmatpush1.msra.mxu0 0.0
    %1682 = vmatprep.subr.mxu0 0.0
    %1683 = vmatpush1.msra.mxu0 0.0
    %1684 = vmatprep.subr.mxu0 0.0
    %1685 = vmatpush1.msra.mxu0 0.0
    %1686 = vmatprep.subr.mxu0 0.0
    %1687 = vmatpush1.msra.mxu0 0.0
    %1688 = vmatprep.subr.mxu0 0.0
    %1689 = vmatpush1.msra.mxu0 0.0
    %1690 = vmatprep.mubr.f32.mxu0 0.0
    %1691 = vmatmul.mubr.f32.gmra.mrb[0].mxu0 %v1624
    %v1692 = vpop.f32.mrb[0].mxu0
    %v1693 = vadd.f32 0.0, %v1692
    %v1694 = vpop.f32.mrb[0].mxu0
    %1695 = vdwg.mxu0
    %v1696 = vadd.f32 %v1178, %v1693
    %v1697 = vxor.u32 %v1696, 2147483648
    %v1698 = vmul.f32 %v1697, 1.442695
    %v1699 = vpow.pop %v1698
    %v1700 = vadd.f32 %v1699, 1.0
    %v1701 = vrcp.pop %v1700
    %v1702 = vmul.f32 1.0, %v1701
    %v1703 = vadd.f32 %v1693, %v1269
    %1705 = vrot.lane.b32.xlu0 %v1703, 64
    %v1706 = vpop.permute.xlu0 %1705
    %v1708 = vmul.f32 %v1702, %v1706
    %1710 = vrot.lane.b32.xlu0 %v1708, 64
    %v1711 = vpop.permute.xlu0 %1710
    %v1713 = vadd.f32 %v1178, %v1711
    %v1714 = vtanh.pop %v1713
    %v1715 = vsub.f32 1.0, %v1702
    %1717 = vrot.lane.b32.xlu0 %v1714, 96
    %v1718 = vpop.permute.xlu0 %1717
    %v1720 = vmul.f32 %v1715, %v1718
    %v1722 = vmul.f32 %v1702, %v1621
    %v1723 = vadd.f32 %v1720, %v1722
    %1725 = vrot.lane.b32.xlu0 %v1723, 96
    %v1726 = vpop.permute.xlu0 %1725
    %v1727 = vsel %vm203, %v1726, 0
    %1729 = vmatprep.subr.mxu0 0.0
    %1730 = vmatpush1.msra.mxu0 %v1084
    %1731 = vmatprep.subr.mxu0 0.0
    %1732 = vmatpush1.msra.mxu0 %v1085
    %1733 = vmatprep.subr.mxu0 0.0
    %1734 = vmatpush1.msra.mxu0 %v1086
    %1735 = vmatprep.subr.mxu0 0.0
    %1736 = vmatpush1.msra.mxu0 %v1087
    %1737 = vmatprep.subr.mxu0 0.0
    %1738 = vmatpush1.msra.mxu0 0.0
    %1739 = vmatprep.subr.mxu0 0.0
    %1740 = vmatpush1.msra.mxu0 0.0
    %1741 = vmatprep.subr.mxu0 0.0
    %1742 = vmatpush1.msra.mxu0 0.0
    %1743 = vmatprep.subr.mxu0 0.0
    %1744 = vmatpush1.msra.mxu0 0.0
    %1745 = vmatprep.subr.mxu0 0.0
    %1746 = vmatpush1.msra.mxu0 0.0
    %1747 = vmatprep.subr.mxu0 0.0
    %1748 = vmatpush1.msra.mxu0 0.0
    %1749 = vmatprep.subr.mxu0 0.0
    %1750 = vmatpush1.msra.mxu0 0.0
    %1751 = vmatprep.subr.mxu0 0.0
    %1752 = vmatpush1.msra.mxu0 0.0
    %1753 = vmatprep.subr.mxu0 0.0
    %1754 = vmatpush1.msra.mxu0 0.0
    %1755 = vmatprep.subr.mxu0 0.0
    %1756 = vmatpush1.msra.mxu0 0.0
    %1757 = vmatprep.subr.mxu0 0.0
    %1758 = vmatpush1.msra.mxu0 0.0
    %1759 = vmatprep.subr.mxu0 0.0
    %1760 = vmatpush1.msra.mxu0 0.0
    %1761 = vmatprep.subr.mxu0 0.0
    %1762 = vmatpush1.msra.mxu0 0.0
    %1763 = vmatprep.subr.mxu0 0.0
    %1764 = vmatpush1.msra.mxu0 0.0
    %1765 = vmatprep.subr.mxu0 0.0
    %1766 = vmatpush1.msra.mxu0 0.0
    %1767 = vmatprep.subr.mxu0 0.0
    %1768 = vmatpush1.msra.mxu0 0.0
    %1769 = vmatprep.subr.mxu0 0.0
    %1770 = vmatpush1.msra.mxu0 0.0
    %1771 = vmatprep.subr.mxu0 0.0
    %1772 = vmatpush1.msra.mxu0 0.0
    %1773 = vmatprep.subr.mxu0 0.0
    %1774 = vmatpush1.msra.mxu0 0.0
    %1775 = vmatprep.subr.mxu0 0.0
    %1776 = vmatpush1.msra.mxu0 0.0
    %1777 = vmatprep.subr.mxu0 0.0
    %1778 = vmatpush1.msra.mxu0 0.0
    %1779 = vmatprep.subr.mxu0 0.0
    %1780 = vmatpush1.msra.mxu0 0.0
    %1781 = vmatprep.subr.mxu0 0.0
    %1782 = vmatpush1.msra.mxu0 0.0
    %1783 = vmatprep.subr.mxu0 0.0
    %1784 = vmatpush1.msra.mxu0 0.0
    %1785 = vmatprep.subr.mxu0 0.0
    %1786 = vmatpush1.msra.mxu0 0.0
    %1787 = vmatprep.subr.mxu0 0.0
    %1788 = vmatpush1.msra.mxu0 0.0
    %1789 = vmatprep.subr.mxu0 0.0
    %1790 = vmatpush1.msra.mxu0 0.0
    %1791 = vmatprep.subr.mxu0 0.0
    %1792 = vmatpush1.msra.mxu0 0.0
    %1793 = vmatprep.mubr.f32.mxu0 0.0
    %1794 = vmatmul.mubr.f32.gmra.mrb[0].mxu0 %v1727
    %v1795 = vpop.f32.mrb[0].mxu0
    %v1796 = vadd.f32 0.0, %v1795
    %v1797 = vpop.f32.mrb[0].mxu0
    %1798 = vdwg.mxu0
    %v1800 = vrot.slane %v1796, 6
    %v1802 = vadd.f32 %v1178, %v1800
    %v1803 = vxor.u32 %v1802, 2147483648
    %v1804 = vmul.f32 %v1803, 1.442695
    %v1805 = vpow.pop %v1804
    %v1806 = vadd.f32 %v1805, 1.0
    %v1807 = vrcp.pop %v1806
    %v1808 = vmul.f32 1.0, %v1807
    %v1809 = vadd.f32 %v1796, %v1269
    %v1811 = vrot.slane %v1809, 6
    %1812 = vrot.lane.b32.xlu0 %v1811, 64
    %v1813 = vpop.permute.xlu0 %1812
    %v1815 = vmul.f32 %v1808, %v1813
    %1817 = vrot.lane.b32.xlu0 %v1815, 64
    %v1818 = vpop.permute.xlu0 %1817
    %v1820 = vadd.f32 %v1178, %v1818
    %v1821 = vtanh.pop %v1820
    %v1822 = vsub.f32 1.0, %v1808
    %1824 = vrot.lane.b32.xlu0 %v1821, 96
    %v1825 = vpop.permute.xlu0 %1824
    %v1827 = vmul.f32 %v1822, %v1825
    %v1828 = vrot.slane %v1723, 6
    %v1830 = vmul.f32 %v1808, %v1828
    %v1831 = vadd.f32 %v1827, %v1830
    %v1833 = vrot.slane %v1831, 2
    %1834 = vrot.lane.b32.xlu0 %v1833, 96
    %v1835 = vpop.permute.xlu0 %1834
    %v1836 = vsel %vm203, %v1835, 0
    %1838 = vmatprep.subr.mxu0 0.0
    %1839 = vmatpush1.msra.mxu0 %v1084
    %1840 = vmatprep.subr.mxu0 0.0
    %1841 = vmatpush1.msra.mxu0 %v1085
    %1842 = vmatprep.subr.mxu0 0.0
    %1843 = vmatpush1.msra.mxu0 %v1086
    %1844 = vmatprep.subr.mxu0 0.0
    %1845 = vmatpush1.msra.mxu0 %v1087
    %1846 = vmatprep.subr.mxu0 0.0
    %1847 = vmatpush1.msra.mxu0 0.0
    %1848 = vmatprep.subr.mxu0 0.0
    %1849 = vmatpush1.msra.mxu0 0.0
    %1850 = vmatprep.subr.mxu0 0.0
    %1851 = vmatpush1.msra.mxu0 0.0
    %1852 = vmatprep.subr.mxu0 0.0
    %1853 = vmatpush1.msra.mxu0 0.0
    %1854 = vmatprep.subr.mxu0 0.0
    %1855 = vmatpush1.msra.mxu0 0.0
    %1856 = vmatprep.subr.mxu0 0.0
    %1857 = vmatpush1.msra.mxu0 0.0
    %1858 = vmatprep.subr.mxu0 0.0
    %1859 = vmatpush1.msra.mxu0 0.0
    %1860 = vmatprep.subr.mxu0 0.0
    %1861 = vmatpush1.msra.mxu0 0.0
    %1862 = vmatprep.subr.mxu0 0.0
    %1863 = vmatpush1.msra.mxu0 0.0
    %1864 = vmatprep.subr.mxu0 0.0
    %1865 = vmatpush1.msra.mxu0 0.0
    %1866 = vmatprep.subr.mxu0 0.0
    %1867 = vmatpush1.msra.mxu0 0.0
    %1868 = vmatprep.subr.mxu0 0.0
    %1869 = vmatpush1.msra.mxu0 0.0
    %1870 = vmatprep.subr.mxu0 0.0
    %1871 = vmatpush1.msra.mxu0 0.0
    %1872 = vmatprep.subr.mxu0 0.0
    %1873 = vmatpush1.msra.mxu0 0.0
    %1874 = vmatprep.subr.mxu0 0.0
    %1875 = vmatpush1.msra.mxu0 0.0
    %1876 = vmatprep.subr.mxu0 0.0
    %1877 = vmatpush1.msra.mxu0 0.0
    %1878 = vmatprep.subr.mxu0 0.0
    %1879 = vmatpush1.msra.mxu0 0.0
    %1880 = vmatprep.subr.mxu0 0.0
    %1881 = vmatpush1.msra.mxu0 0.0
    %1882 = vmatprep.subr.mxu0 0.0
    %1883 = vmatpush1.msra.mxu0 0.0
    %1884 = vmatprep.subr.mxu0 0.0
    %1885 = vmatpush1.msra.mxu0 0.0
    %1886 = vmatprep.subr.mxu0 0.0
    %1887 = vmatpush1.msra.mxu0 0.0
    %1888 = vmatprep.subr.mxu0 0.0
    %1889 = vmatpush1.msra.mxu0 0.0
    %1890 = vmatprep.subr.mxu0 0.0
    %1891 = vmatpush1.msra.mxu0 0.0
    %1892 = vmatprep.subr.mxu0 0.0
    %1893 = vmatpush1.msra.mxu0 0.0
    %1894 = vmatprep.subr.mxu0 0.0
    %1895 = vmatpush1.msra.mxu0 0.0
    %1896 = vmatprep.subr.mxu0 0.0
    %1897 = vmatpush1.msra.mxu0 0.0
    %1898 = vmatprep.subr.mxu0 0.0
    %1899 = vmatpush1.msra.mxu0 0.0
    %1900 = vmatprep.subr.mxu0 0.0
    %1901 = vmatpush1.msra.mxu0 0.0
    %1902 = vmatprep.mubr.f32.mxu0 0.0
    %1903 = vmatmul.mubr.f32.gmra.mrb[0].mxu0 %v1836
    %v1904 = vpop.f32.mrb[0].mxu0
    %v1905 = vadd.f32 0.0, %v1904
    %v1906 = vpop.f32.mrb[0].mxu0
    %1907 = vdwg.mxu0
    %v1909 = vrot.slane %v1905, 4
    %v1911 = vadd.f32 %v1178, %v1909
    %v1912 = vxor.u32 %v1911, 2147483648
    %v1913 = vmul.f32 %v1912, 1.442695
    %v1914 = vpow.pop %v1913
    %v1915 = vadd.f32 %v1914, 1.0
    %v1916 = vrcp.pop %v1915
    %v1917 = vmul.f32 1.0, %v1916
    %v1918 = vadd.f32 %v1905, %v1269
    %v1920 = vrot.slane %v1918, 4
    %1921 = vrot.lane.b32.xlu0 %v1920, 64
    %v1922 = vpop.permute.xlu0 %1921
    %v1924 = vmul.f32 %v1917, %v1922
    %1926 = vrot.lane.b32.xlu0 %v1924, 64
    %v1927 = vpop.permute.xlu0 %1926
    %v1929 = vadd.f32 %v1178, %v1927
    %v1930 = vtanh.pop %v1929
    %v1931 = vsub.f32 1.0, %v1917
    %1933 = vrot.lane.b32.xlu0 %v1930, 96
    %v1934 = vpop.permute.xlu0 %1933
    %v1936 = vmul.f32 %v1931, %v1934
    %v1937 = vrot.slane %v1831, 6
    %v1939 = vmul.f32 %v1917, %v1937
    %v1940 = vadd.f32 %v1936, %v1939
    %v1942 = vrot.slane %v1940, 4
    %1943 = vrot.lane.b32.xlu0 %v1942, 96
    %v1944 = vpop.permute.xlu0 %1943
    %v1945 = vsel %vm203, %v1944, 0
    %1947 = vmatprep.subr.mxu0 0.0
    %1948 = vmatpush1.msra.mxu0 %v1084
    %1949 = vmatprep.subr.mxu0 0.0
    %1950 = vmatpush1.msra.mxu0 %v1085
    %1951 = vmatprep.subr.mxu0 0.0
    %1952 = vmatpush1.msra.mxu0 %v1086
    %1953 = vmatprep.subr.mxu0 0.0
    %1954 = vmatpush1.msra.mxu0 %v1087
    %1955 = vmatprep.subr.mxu0 0.0
    %1956 = vmatpush1.msra.mxu0 0.0
    %1957 = vmatprep.subr.mxu0 0.0
    %1958 = vmatpush1.msra.mxu0 0.0
    %1959 = vmatprep.subr.mxu0 0.0
    %1960 = vmatpush1.msra.mxu0 0.0
    %1961 = vmatprep.subr.mxu0 0.0
    %1962 = vmatpush1.msra.mxu0 0.0
    %1963 = vmatprep.subr.mxu0 0.0
    %1964 = vmatpush1.msra.mxu0 0.0
    %1965 = vmatprep.subr.mxu0 0.0
    %1966 = vmatpush1.msra.mxu0 0.0
    %1967 = vmatprep.subr.mxu0 0.0
    %1968 = vmatpush1.msra.mxu0 0.0
    %1969 = vmatprep.subr.mxu0 0.0
    %1970 = vmatpush1.msra.mxu0 0.0
    %1971 = vmatprep.subr.mxu0 0.0
    %1972 = vmatpush1.msra.mxu0 0.0
    %1973 = vmatprep.subr.mxu0 0.0
    %1974 = vmatpush1.msra.mxu0 0.0
    %1975 = vmatprep.subr.mxu0 0.0
    %1976 = vmatpush1.msra.mxu0 0.0
    %1977 = vmatprep.subr.mxu0 0.0
    %1978 = vmatpush1.msra.mxu0 0.0
    %1979 = vmatprep.subr.mxu0 0.0
    %1980 = vmatpush1.msra.mxu0 0.0
    %1981 = vmatprep.subr.mxu0 0.0
    %1982 = vmatpush1.msra.mxu0 0.0
    %1983 = vmatprep.subr.mxu0 0.0
    %1984 = vmatpush1.msra.mxu0 0.0
    %1985 = vmatprep.subr.mxu0 0.0
    %1986 = vmatpush1.msra.mxu0 0.0
    %1987 = vmatprep.subr.mxu0 0.0
    %1988 = vmatpush1.msra.mxu0 0.0
    %1989 = vmatprep.subr.mxu0 0.0
    %1990 = vmatpush1.msra.mxu0 0.0
    %1991 = vmatprep.subr.mxu0 0.0
    %1992 = vmatpush1.msra.mxu0 0.0
    %1993 = vmatprep.subr.mxu0 0.0
    %1994 = vmatpush1.msra.mxu0 0.0
    %1995 = vmatprep.subr.mxu0 0.0
    %1996 = vmatpush1.msra.mxu0 0.0
    %1997 = vmatprep.subr.mxu0 0.0
    %1998 = vmatpush1.msra.mxu0 0.0
    %1999 = vmatprep.subr.mxu0 0.0
    %2000 = vmatpush1.msra.mxu0 0.0
    %2001 = vmatprep.subr.mxu0 0.0
    %2002 = vmatpush1.msra.mxu0 0.0
    %2003 = vmatprep.subr.mxu0 0.0
    %2004 = vmatpush1.msra.mxu0 0.0
    %2005 = vmatprep.subr.mxu0 0.0
    %2006 = vmatpush1.msra.mxu0 0.0
    %2007 = vmatprep.subr.mxu0 0.0
    %2008 = vmatpush1.msra.mxu0 0.0
    %2009 = vmatprep.subr.mxu0 0.0
    %2010 = vmatpush1.msra.mxu0 0.0
    %2011 = vmatprep.mubr.f32.mxu0 0.0
    %2012 = vmatmul.mubr.f32.gmra.mrb[0].mxu0 %v1945
    %v2013 = vpop.f32.mrb[0].mxu0
    %v2014 = vadd.f32 0.0, %v2013
    %v2015 = vpop.f32.mrb[0].mxu0
    %2016 = vdwg.mxu0
    %v2018 = vrot.slane %v2014, 2
    %v2020 = vadd.f32 %v1178, %v2018
    %v2021 = vxor.u32 %v2020, 2147483648
    %v2022 = vmul.f32 %v2021, 1.442695
    %v2023 = vpow.pop %v2022
    %v2024 = vadd.f32 %v2023, 1.0
    %v2025 = vrcp.pop %v2024
    %v2026 = vmul.f32 1.0, %v2025
    %v2027 = vadd.f32 %v2014, %v1269
    %v2029 = vrot.slane %v2027, 2
    %2030 = vrot.lane.b32.xlu0 %v2029, 64
    %v2031 = vpop.permute.xlu0 %2030
    %v2033 = vmul.f32 %v2026, %v2031
    %2035 = vrot.lane.b32.xlu0 %v2033, 64
    %v2036 = vpop.permute.xlu0 %2035
    %v2038 = vadd.f32 %v1178, %v2036
    %v2039 = vtanh.pop %v2038
    %v2040 = vsub.f32 1.0, %v2026
    %2042 = vrot.lane.b32.xlu0 %v2039, 96
    %v2043 = vpop.permute.xlu0 %2042
    %v2045 = vmul.f32 %v2040, %v2043
    %v2046 = vrot.slane %v1940, 6
    %v2048 = vmul.f32 %v2026, %v2046
    %v2049 = vadd.f32 %v2045, %v2048
    %v2050 = vsel %vm1071, %v1293, %v1401
    %v2051 = vsel %vm1073, %v2050, %v1510
    %v2052 = vsel %vm1075, %v2051, %v1619
    %v2053 = vsel %vm1071, %v1723, %v1831
    %v2054 = vsel %vm1073, %v2053, %v1940
    %v2055 = vsel %vm1075, %v2054, %v2049
    %v2056 = vtanh.pop %v2052
    %v2057 = vtanh.pop %v2055
    %v2058 = vld [vmem:[#allocation7] sm:$0xff]
    %v2059 = vld [vmem:[#allocation7 + $0x8] sm:$0xff]
    %v2060 = vld [vmem:[#allocation7 + $0x10] sm:$0xff]
    %v2061 = vld [vmem:[#allocation7 + $0x18] sm:$0xff]
    %v2062 = vld [vmem:[#allocation9] sm:$0x1]
    %v2064 = vlaneseq
    %v2065 = vshrl.u32 %v2064, 7
    %v2066 = vsub.s32 0, %v2065
    %v2067 = vrot.slane %v2062, %v2066
    %2071 = vrot.lane.b32.xlu0 %v2056, 96
    %v2072 = vpop.permute.xlu0 %2071
    %2073 = vrot.lane.b32.xlu0 %v2057, 96
    %v2074 = vpop.permute.xlu0 %2073
    %v2075 = vsel %vm203, %v2072, 0
    %v2077 = vsel %vm203, %v2074, 0
    %2079 = vmatprep.subr.mxu0 0.0
    %2080 = vmatpush1.msra.mxu0 %v2058
    %2081 = vmatprep.subr.mxu0 0.0
    %2082 = vmatpush1.msra.mxu0 %v2059
    %2083 = vmatprep.subr.mxu0 0.0
    %2084 = vmatpush1.msra.mxu0 %v2060
    %2085 = vmatprep.subr.mxu0 0.0
    %2086 = vmatpush1.msra.mxu0 %v2061
    %2087 = vmatprep.subr.mxu0 0.0
    %2088 = vmatpush1.msra.mxu0 0.0
    %2089 = vmatprep.subr.mxu0 0.0
    %2090 = vmatpush1.msra.mxu0 0.0
    %2091 = vmatprep.subr.mxu0 0.0
    %2092 = vmatpush1.msra.mxu0 0.0
    %2093 = vmatprep.subr.mxu0 0.0
    %2094 = vmatpush1.msra.mxu0 0.0
    %2095 = vmatprep.subr.mxu0 0.0
    %2096 = vmatpush1.msra.mxu0 0.0
    %2097 = vmatprep.subr.mxu0 0.0
    %2098 = vmatpush1.msra.mxu0 0.0
    %2099 = vmatprep.subr.mxu0 0.0
    %2100 = vmatpush1.msra.mxu0 0.0
    %2101 = vmatprep.subr.mxu0 0.0
    %2102 = vmatpush1.msra.mxu0 0.0
    %2103 = vmatprep.subr.mxu0 0.0
    %2104 = vmatpush1.msra.mxu0 0.0
    %2105 = vmatprep.subr.mxu0 0.0
    %2106 = vmatpush1.msra.mxu0 0.0
    %2107 = vmatprep.subr.mxu0 0.0
    %2108 = vmatpush1.msra.mxu0 0.0
    %2109 = vmatprep.subr.mxu0 0.0
    %2110 = vmatpush1.msra.mxu0 0.0
    %2111 = vmatprep.subr.mxu0 0.0
    %2112 = vmatpush1.msra.mxu0 0.0
    %2113 = vmatprep.subr.mxu0 0.0
    %2114 = vmatpush1.msra.mxu0 0.0
    %2115 = vmatprep.subr.mxu0 0.0
    %2116 = vmatpush1.msra.mxu0 0.0
    %2117 = vmatprep.subr.mxu0 0.0
    %2118 = vmatpush1.msra.mxu0 0.0
    %2119 = vmatprep.subr.mxu0 0.0
    %2120 = vmatpush1.msra.mxu0 0.0
    %2121 = vmatprep.subr.mxu0 0.0
    %2122 = vmatpush1.msra.mxu0 0.0
    %2123 = vmatprep.subr.mxu0 0.0
    %2124 = vmatpush1.msra.mxu0 0.0
    %2125 = vmatprep.subr.mxu0 0.0
    %2126 = vmatpush1.msra.mxu0 0.0
    %2127 = vmatprep.subr.mxu0 0.0
    %2128 = vmatpush1.msra.mxu0 0.0
    %2129 = vmatprep.subr.mxu0 0.0
    %2130 = vmatpush1.msra.mxu0 0.0
    %2131 = vmatprep.subr.mxu0 0.0
    %2132 = vmatpush1.msra.mxu0 0.0
    %2133 = vmatprep.subr.mxu0 0.0
    %2134 = vmatpush1.msra.mxu0 0.0
    %2135 = vmatprep.subr.mxu0 0.0
    %2136 = vmatpush1.msra.mxu0 0.0
    %2137 = vmatprep.subr.mxu0 0.0
    %2138 = vmatpush1.msra.mxu0 0.0
    %2139 = vmatprep.subr.mxu0 0.0
    %2140 = vmatpush1.msra.mxu0 0.0
    %2141 = vmatprep.subr.mxu0 0.0
    %2142 = vmatpush1.msra.mxu0 0.0
    %2143 = vmatprep.mubr.f32.mxu0 0.0
    %2144 = vmatmul.mubr.f32.gmra.mrb[0].mxu0 %v2075
    %v2145 = vpop.f32.mrb[0].mxu0
    %v2146 = vadd.f32 %v2067, %v2145
    %v2147 = vpop.f32.mrb[0].mxu0
    %2148 = vmatprep.mubr.f32.mxu0 0.0
    %2149 = vmatmul.mubr.f32.gmra.mrb[0].mxu0 %v2077
    %v2150 = vpop.f32.mrb[0].mxu0
    %v2151 = vadd.f32 %v2067, %v2150
    %v2152 = vpop.f32.mrb[0].mxu0
    %2153 = vdwg.mxu0
    %2154 = vst [vmem:[%s12] sm:$0xff] %v2146
    %2155 = vst [vmem:[%s12 + $0x8] sm:$0xff] %v2151
    // Predicated region
    $region70: #{generator_forward.1} parent=1 // pred_check
      _
    $region71: #{generator_forward.1} parent=1 // pred_check_branch
      %2157 = sbr.rel (0) target = $region73
    $region72: #{generator_forward.1} parent=1 // pred_region
      _
    $region73: #{generator_forward.1} parent=1 // pred_fallthru
      _
    // Predicated region
    $region74: #{generator_forward.1} parent=1 // pred_check
      _
    $region75: #{generator_forward.1} parent=1 // pred_check_branch
      %2159 = sbr.rel (0) target = $region77
    $region76: #{generator_forward.1} parent=1 // pred_region
      _
    $region77: #{generator_forward.1} parent=1 // pred_fallthru
      _
    %2160 = vsyncpa [#allocation3], 1
    %2161 = vsyncpa [#allocation5], 1
    %2162 = vsyncpa [#allocation8], 1

</llo_original>
